<compile_context>
chip_gen: v7x
topology: tpu7x:2x2x1
jax: 0.10.0
libtpu: 0.0.40
codegen_flags: <defaults>
</compile_context>

<pallas_src>
import jax
import jax.numpy as jnp
from jax.experimental import pallas as pl
from jax.experimental.pallas import tpu as pltpu

NUM_FEATURES = 2048  # fixed in the module (__init__: self.num_features = 2048)


def bilinear_kernel(x_ref, q_ref, wv_ref, bv_ref, wq_ref, bq_ref,
                    wo_ref, bo_ref, out_ref):
    # TODO(synk): dropout is skipped (inference mode => identity); self.bnv is
    # defined in the module but never used in forward.
    # Matmul operands in bf16, f32 accumulation on the MXU.
    x_bf = x_ref[...].astype(jnp.bfloat16)
    q_bf = q_ref[...].astype(jnp.bfloat16)
    v = jnp.dot(x_bf, wv_ref[...],
                preferred_element_type=jnp.float32) + bv_ref[...]
    w = jnp.dot(q_bf, wq_ref[...],
                preferred_element_type=jnp.float32) + bq_ref[...]
    # Elementwise product + relu stay in f32 (VPU).
    o = jnp.maximum(v * w, 0.0)
    y = jnp.dot(o.astype(jnp.bfloat16), wo_ref[...],
                preferred_element_type=jnp.float32) + bo_ref[...]
    out_ref[...] = jnp.maximum(y, 0.0)


def bilinear_forward(x, word, wv, bv, wq, bq, wo, bo, *, tb=256):
    """x: [B, num_inputs], word: [B, input_emb_size].
    wv: [num_inputs, 2048], wq: [emb, 2048], wo: [2048, num_outputs]
    (i.e. nn.Linear weights pre-transposed to [in, out]).
    Biases are passed as [1, F] rows so they broadcast inside the kernel."""
    B, num_inputs = x.shape
    emb = word.shape[1]
    num_outputs = wo.shape[1]

    # bf16 weights: halves the (dominant) weight DMA; biases stay f32.
    wv_bf = wv.astype(jnp.bfloat16)
    wq_bf = wq.astype(jnp.bfloat16)
    wo_bf = wo.astype(jnp.bfloat16)

    # Batch tile: multiple of 8 sublanes, default 256, never larger than the
    # (rounded-up) batch.  Pad B to a multiple of the tile; slice off at end.
    tb = min(tb, max(8, ((B + 7) // 8) * 8))
    b_pad = ((B + tb - 1) // tb) * tb
    if b_pad != B:
        x = jnp.pad(x, ((0, b_pad - B), (0, 0)))
        word = jnp.pad(word, ((0, b_pad - B), (0, 0)))

    grid = (b_pad // tb,)

    out = pl.pallas_call(
        bilinear_kernel,
        out_shape=jax.ShapeDtypeStruct((b_pad, num_outputs), jnp.float32),
        grid_spec=pltpu.PrefetchScalarGridSpec(
            num_scalar_prefetch=0,
            grid=grid,
            in_specs=[
                # Streaming activation tiles (double-buffered by Pallas).
                pl.BlockSpec((tb, num_inputs), lambda i: (i, 0)),
                pl.BlockSpec((tb, emb), lambda i: (i, 0)),
                # Weights / biases: constant index_map -> VMEM-resident,
                # DMA'd exactly once across the whole grid.
                pl.BlockSpec((num_inputs, NUM_FEATURES), lambda i: (0, 0)),
                pl.BlockSpec((1, NUM_FEATURES), lambda i: (0, 0)),
                pl.BlockSpec((emb, NUM_FEATURES), lambda i: (0, 0)),
                pl.BlockSpec((1, NUM_FEATURES), lambda i: (0, 0)),
                pl.BlockSpec((NUM_FEATURES, num_outputs), lambda i: (0, 0)),
                pl.BlockSpec((1, num_outputs), lambda i: (0, 0)),
            ],
            out_specs=pl.BlockSpec((tb, num_outputs), lambda i: (i, 0)),
        ),
        compiler_params=pltpu.CompilerParams(
            dimension_semantics=("parallel",)),
    )(x, word, wv_bf, bv, wq_bf, bq, wo_bf, bo)
    return out[:B]


def reference_forward(x, word, wv, bv, wq, bq, wo, bo):
    v = x @ wv + bv
    w = word @ wq + bq
    o = jnp.maximum(v * w, 0.0)
    return jnp.maximum(o @ wo + bo, 0.0)


if __name__ == "__main__":
    # Small, module-consistent shapes.
    B = 8                 # batch
    num_inputs = 32       # "num_inputs" (visual feature dim)
    input_emb_size = 64   # word embedding dim
    num_outputs = 128     # output dim

    key = jax.random.PRNGKey(0)
    kx, kq, k1, k2, k3, k4, k5, k6 = jax.random.split(key, 8)

    # Deterministic synthetic parameters (Linear weights stored transposed:
    # [in_features, out_features]) — synthetic kernel, no checkpoint.
    scale = 0.02
    wv = scale * jax.random.normal(k1, (num_inputs, NUM_FEATURES), jnp.float32)
    bv = scale * jax.random.normal(k2, (1, NUM_FEATURES), jnp.float32)
    wq = scale * jax.random.normal(k3, (input_emb_size, NUM_FEATURES), jnp.float32)
    bq = scale * jax.random.normal(k4, (1, NUM_FEATURES), jnp.float32)
    wo = scale * jax.random.normal(k5, (NUM_FEATURES, num_outputs), jnp.float32)
    bo = scale * jax.random.normal(k6, (1, num_outputs), jnp.float32)

    x = jax.random.normal(kx, (B, num_inputs), jnp.float32)
    word = jax.random.normal(kq, (B, input_emb_size), jnp.float32)

    out = bilinear_forward(x, word, wv, bv, wq, bq, wo, bo)
    out = jax.block_until_ready(out)

    ref = reference_forward(x, word, wv, bv, wq, bq, wo, bo)
    assert out.shape == (B, num_outputs)
    # bf16 matmul operands => loosen tolerance vs the f32 reference.
    assert jnp.allclose(out, ref, atol=2e-2, rtol=2e-2), (
        float(jnp.max(jnp.abs(out - ref))))

    print("KERNEL_OK")
</pallas_src>

<mosaic_0001>
module attributes {stable_mosaic.version = 11 : i64} {
  func.func @bilinear_kernel(%arg0: i32, %arg1: memref<8x32xf32, #tpu.memory_space<vmem>>, %arg2: memref<8x64xf32, #tpu.memory_space<vmem>>, %arg3: memref<32x2048xbf16, #tpu.memory_space<vmem>>, %arg4: memref<1x2048xf32, #tpu.memory_space<vmem>>, %arg5: memref<64x2048xbf16, #tpu.memory_space<vmem>>, %arg6: memref<1x2048xf32, #tpu.memory_space<vmem>>, %arg7: memref<2048x128xbf16, #tpu.memory_space<vmem>>, %arg8: memref<1x128xf32, #tpu.memory_space<vmem>>, %arg9: memref<8x128xf32, #tpu.memory_space<vmem>>) attributes {dimension_semantics = [#tpu.dimension_semantics<parallel>], iteration_bounds = array<i64: 1>, scalar_prefetch = 0 : i64, scratch_operands = 0 : i64, tpu.core_type = #tpu.core_type<tc>, window_params = [{transform_indices = @transform_0, window_bounds = array<i64: 8, 32>}, {transform_indices = @transform_1, window_bounds = array<i64: 8, 64>}, {pipeline_mode = #tpu.pipeline_mode<synchronous>, transform_indices = @transform_2, window_bounds = array<i64: 32, 2048>}, {pipeline_mode = #tpu.pipeline_mode<synchronous>, transform_indices = @transform_3, window_bounds = array<i64: 1, 2048>}, {pipeline_mode = #tpu.pipeline_mode<synchronous>, transform_indices = @transform_4, window_bounds = array<i64: 64, 2048>}, {pipeline_mode = #tpu.pipeline_mode<synchronous>, transform_indices = @transform_5, window_bounds = array<i64: 1, 2048>}, {pipeline_mode = #tpu.pipeline_mode<synchronous>, transform_indices = @transform_6, window_bounds = array<i64: 2048, 128>}, {pipeline_mode = #tpu.pipeline_mode<synchronous>, transform_indices = @transform_7, window_bounds = array<i64: 1, 128>}, {transform_indices = @transform_8, window_bounds = array<i64: 8, 128>}]} {
    %c0 = arith.constant 0 : index
    %c0_0 = arith.constant 0 : index
    %0 = vector.load %arg1[%c0, %c0_0] : memref<8x32xf32, #tpu.memory_space<vmem>>, vector<8x32xf32>
    %1 = arith.truncf %0 : vector<8x32xf32> to vector<8x32xbf16>
    %c0_1 = arith.constant 0 : index
    %c0_2 = arith.constant 0 : index
    %2 = vector.load %arg2[%c0_1, %c0_2] : memref<8x64xf32, #tpu.memory_space<vmem>>, vector<8x64xf32>
    %3 = arith.truncf %2 : vector<8x64xf32> to vector<8x64xbf16>
    %c0_3 = arith.constant 0 : index
    %c0_4 = arith.constant 0 : index
    %4 = vector.load %arg3[%c0_3, %c0_4] : memref<32x2048xbf16, #tpu.memory_space<vmem>>, vector<32x2048xbf16>
    %cst = arith.constant dense<0.000000e+00> : vector<8x2048xf32>
    %5 = tpu.matmul %1, %4, %cst {dimension_numbers = #tpu.dot_dimension_numbers<[1], [0], [0], [1], [0, 0, 1, 1], [], []>} : vector<8x32xbf16>, vector<32x2048xbf16>, vector<8x2048xf32> -> vector<8x2048xf32>
    %c0_5 = arith.constant 0 : index
    %c0_6 = arith.constant 0 : index
    %6 = vector.load %arg4[%c0_5, %c0_6] : memref<1x2048xf32, #tpu.memory_space<vmem>>, vector<1x2048xf32>
    %7 = vector.broadcast %6 : vector<1x2048xf32> to vector<8x2048xf32>
    %8 = arith.addf %5, %7 : vector<8x2048xf32>
    %c0_7 = arith.constant 0 : index
    %c0_8 = arith.constant 0 : index
    %9 = vector.load %arg5[%c0_7, %c0_8] : memref<64x2048xbf16, #tpu.memory_space<vmem>>, vector<64x2048xbf16>
    %cst_9 = arith.constant dense<0.000000e+00> : vector<8x2048xf32>
    %10 = tpu.matmul %3, %9, %cst_9 {dimension_numbers = #tpu.dot_dimension_numbers<[1], [0], [0], [1], [0, 0, 1, 1], [], []>} : vector<8x64xbf16>, vector<64x2048xbf16>, vector<8x2048xf32> -> vector<8x2048xf32>
    %c0_10 = arith.constant 0 : index
    %c0_11 = arith.constant 0 : index
    %11 = vector.load %arg6[%c0_10, %c0_11] : memref<1x2048xf32, #tpu.memory_space<vmem>>, vector<1x2048xf32>
    %12 = vector.broadcast %11 : vector<1x2048xf32> to vector<8x2048xf32>
    %13 = arith.addf %10, %12 : vector<8x2048xf32>
    %14 = arith.mulf %8, %13 : vector<8x2048xf32>
    %cst_12 = arith.constant 0.000000e+00 : f32
    %15 = vector.broadcast %cst_12 : f32 to vector<8x2048xf32>
    %16 = arith.maximumf %14, %15 : vector<8x2048xf32>
    %17 = arith.truncf %16 : vector<8x2048xf32> to vector<8x2048xbf16>
    %c0_13 = arith.constant 0 : index
    %c0_14 = arith.constant 0 : index
    %18 = vector.load %arg7[%c0_13, %c0_14] : memref<2048x128xbf16, #tpu.memory_space<vmem>>, vector<2048x128xbf16>
    %cst_15 = arith.constant dense<0.000000e+00> : vector<8x128xf32>
    %19 = tpu.matmul %17, %18, %cst_15 {dimension_numbers = #tpu.dot_dimension_numbers<[1], [0], [0], [1], [0, 0, 1, 1], [], []>} : vector<8x2048xbf16>, vector<2048x128xbf16>, vector<8x128xf32> -> vector<8x128xf32>
    %c0_16 = arith.constant 0 : index
    %c0_17 = arith.constant 0 : index
    %20 = vector.load %arg8[%c0_16, %c0_17] : memref<1x128xf32, #tpu.memory_space<vmem>>, vector<1x128xf32>
    %21 = vector.broadcast %20 : vector<1x128xf32> to vector<8x128xf32>
    %22 = arith.addf %19, %21 : vector<8x128xf32>
    %cst_18 = arith.constant 0.000000e+00 : f32
    %23 = vector.broadcast %cst_18 : f32 to vector<8x128xf32>
    %24 = arith.maximumf %22, %23 : vector<8x128xf32>
    %c0_19 = arith.constant 0 : index
    %c0_20 = arith.constant 0 : index
    %25 = vector.load %arg9[%c0_19, %c0_20] : memref<8x128xf32, #tpu.memory_space<vmem>>, vector<8x128xf32>
    tpu.vector_store %arg9[%c0_19, %c0_20], %24 {strides = array<i32>} : memref<8x128xf32, #tpu.memory_space<vmem>>, vector<8x128xf32>,
    return
  }
  func.func @transform_0(%arg0: i32) -> (i32, i32) {
    %c0_i32 = arith.constant 0 : i32
    %c0_i32_0 = arith.constant 0 : i32
    return %arg0, %c0_i32 : i32, i32
  }
  func.func @transform_1(%arg0: i32) -> (i32, i32) {
    %c0_i32 = arith.constant 0 : i32
    %c0_i32_0 = arith.constant 0 : i32
    return %arg0, %c0_i32 : i32, i32
  }
  func.func @transform_2(%arg0: i32) -> (i32, i32) {
    %c0_i32 = arith.constant 0 : i32
    %c0_i32_0 = arith.constant 0 : i32
    %c0_i32_1 = arith.constant 0 : i32
    return %c0_i32, %c0_i32_0 : i32, i32
  }
  func.func @transform_3(%arg0: i32) -> (i32, i32) {
    %c0_i32 = arith.constant 0 : i32
    %c0_i32_0 = arith.constant 0 : i32
    %c0_i32_1 = arith.constant 0 : i32
    return %c0_i32, %c0_i32_0 : i32, i32
  }
  func.func @transform_4(%arg0: i32) -> (i32, i32) {
    %c0_i32 = arith.constant 0 : i32
    %c0_i32_0 = arith.constant 0 : i32
    %c0_i32_1 = arith.constant 0 : i32
    return %c0_i32, %c0_i32_0 : i32, i32
  }
  func.func @transform_5(%arg0: i32) -> (i32, i32) {
    %c0_i32 = arith.constant 0 : i32
    %c0_i32_0 = arith.constant 0 : i32
    %c0_i32_1 = arith.constant 0 : i32
    return %c0_i32, %c0_i32_0 : i32, i32
  }
  func.func @transform_6(%arg0: i32) -> (i32, i32) {
    %c0_i32 = arith.constant 0 : i32
    %c0_i32_0 = arith.constant 0 : i32
    %c0_i32_1 = arith.constant 0 : i32
    return %c0_i32, %c0_i32_0 : i32, i32
  }
  func.func @transform_7(%arg0: i32) -> (i32, i32) {
    %c0_i32 = arith.constant 0 : i32
    %c0_i32_0 = arith.constant 0 : i32
    %c0_i32_1 = arith.constant 0 : i32
    return %c0_i32, %c0_i32_0 : i32, i32
  }
  func.func @transform_8(%arg0: i32) -> (i32, i32) {
    %c0_i32 = arith.constant 0 : i32
    %c0_i32_0 = arith.constant 0 : i32
    return %arg0, %c0_i32 : i32, i32
  }
}

</mosaic_0001>

<llo_original>
// kernel: tpu_custom_call.1
$region0: #{tpu_custom_call.1}
  #allocation0 [shape = 'u32[]', space=smem, size = 0x4, offset = 0x4, fixed_abs, tag = 'smem constant byte address 0x4 - core index']
  #allocation1 [shape = 'u32[144,128]{1,0:T(1,128)}', space=vmem, size = 0x12000, scoped, tag = 'internal scratch']
  %s0 = inlined_call_operand.hbm [shape: f32[8,32], index: 0, kind: input, shape index: {}]
  %s1 = inlined_call_operand.hbm [shape: f32[8,64], index: 1, kind: input, shape index: {}]
  %s2 = inlined_call_operand.hbm [shape: bf16[32,2048], index: 2, kind: input, shape index: {}]
  %s3 = inlined_call_operand.hbm [shape: f32[1,2048], index: 3, kind: input, shape index: {}]
  %s4 = inlined_call_operand.hbm [shape: bf16[64,2048], index: 4, kind: input, shape index: {}]
  %s5 = inlined_call_operand.vmem [shape: f32[1,2048], index: 5, kind: input, shape index: {}]
  %s6 = inlined_call_operand.hbm [shape: bf16[2048,128], index: 6, kind: input, shape index: {}]
  %s7 = inlined_call_operand.vmem [shape: f32[1,128], index: 7, kind: input, shape index: {}]
  %s8 = inlined_call_operand.hbm [shape: f32[8,128], index: 8, kind: output, shape index: {}]
  %s9 = sld [smem:[#allocation0]]
  $region66: #{tpu_custom_call.1} parent=0
    _
  %s11 = ssub.s32 1, %s9
  %s12 = scalar_select 0, %s11, %s9
  $region1: #{tpu_custom_call.1} parent=0
    #allocation2 [shape = 'u8[4096]{0}', space=vmem, size = 0x1000, scoped, tag = 'input window, operand 0, single buffered']
    #allocation3 [shape = 's32[1]{0}', space=sflag, size = 0x4, scoped, tag = 'scoped memory for tpu_custom_call.1']
    #allocation4 [shape = 's32[1]{0}', space=sflag, size = 0x4, scoped, tag = 'scoped memory for tpu_custom_call.1']
    #allocation5 [shape = 'u8[4096]{0}', space=vmem, size = 0x1000, scoped, tag = 'input window, operand 1, single buffered']
    #allocation6 [shape = 's32[1]{0}', space=sflag, size = 0x4, scoped, tag = 'scoped memory for tpu_custom_call.1']
    #allocation7 [shape = 'u8[131072]{0}', space=vmem, size = 0x20000, scoped, tag = 'input window, operand 2, single buffered']
    #allocation8 [shape = 'u8[8192]{0}', space=vmem, size = 0x2000, scoped, tag = 'input window, operand 3, single buffered']
    #allocation9 [shape = 's32[1]{0}', space=sflag, size = 0x4, scoped, tag = 'scoped memory for tpu_custom_call.1']
    #allocation10 [shape = 'u8[262144]{0}', space=vmem, size = 0x40000, scoped, tag = 'input window, operand 4, single buffered']
    #allocation11 [shape = 'u8[524288]{0}', space=vmem, size = 0x80000, scoped, tag = 'input window, operand 6, single buffered']
    #allocation12 [shape = 's32[1]{0}', space=sflag, size = 0x4, scoped, tag = 'scoped memory for tpu_custom_call.1']
    #allocation13 [shape = 'u8[4096]{0}', space=vmem, size = 0x1000, scoped, tag = 'output window, operand 0, single buffered']
    %13 = vsyncpa [#allocation3], 0
    %14 = vsyncpa [#allocation6], 0
    %15 = vsyncpa [#allocation9], 0
    %16 = vsyncpa [#allocation12], 0
    %17 = vsyncpa [#allocation4], 0
    // Predicated region
    $region2: #{tpu_custom_call.1} parent=1 // pred_check
      _
    $region3: #{tpu_custom_call.1} parent=1 // pred_check_branch
      %19 = sbr.rel (0) target = $region5
    $region4: #{tpu_custom_call.1} parent=1 // pred_region
      %s21 = ssub.s32 128, 128
      %22 = vsyncadd [#allocation3], %s21
      %s24 = sshll.u32 [#allocation2], 4
      %s25 = int_to_ptr.vmem [resolvable:$true] %s24
      %27 = dma.hbm_to_vmem [thread:$0]  %s0, 128, %s25, [#allocation3]
    $region5: #{tpu_custom_call.1} parent=1 // pred_fallthru
      _
    // Predicated region
    $region6: #{tpu_custom_call.1} parent=1 // pred_check
      _
    $region7: #{tpu_custom_call.1} parent=1 // pred_check_branch
      %29 = sbr.rel (0) target = $region9
    $region8: #{tpu_custom_call.1} parent=1 // pred_region
      %s31 = ssub.s32 128, 128
      %32 = vsyncadd [#allocation6], %s31
      %s34 = sshll.u32 [#allocation5], 4
      %s35 = int_to_ptr.vmem [resolvable:$true] %s34
      %37 = dma.hbm_to_vmem [thread:$0]  %s1, 128, %s35, [#allocation6]
    $region9: #{tpu_custom_call.1} parent=1 // pred_fallthru
      _
    // Predicated region
    $region10: #{tpu_custom_call.1} parent=1 // pred_check
      _
    $region11: #{tpu_custom_call.1} parent=1 // pred_check_branch
      %39 = sbr.rel (0) target = $region13
    $region12: #{tpu_custom_call.1} parent=1 // pred_region
      %s41 = ssub.s32 4096, 4096
      %42 = vsyncadd [#allocation6], %s41
      %s43 = sshll.u32 [#allocation7], 4
      %s44 = int_to_ptr.vmem [resolvable:$true] %s43
      %49 = dma.hbm_to_vmem [thread:$0]  %s2, 4096, %s44, [#allocation6], 1024, 1024, 64
    $region13: #{tpu_custom_call.1} parent=1 // pred_fallthru
      _
    // Predicated region
    $region14: #{tpu_custom_call.1} parent=1 // pred_check
      _
    $region15: #{tpu_custom_call.1} parent=1 // pred_check_branch
      %51 = sbr.rel (0) target = $region17
    $region16: #{tpu_custom_call.1} parent=1 // pred_region
      %s53 = ssub.s32 256, 256
      %54 = vsyncadd [#allocation9], %s53
      %s56 = sshll.u32 [#allocation8], 4
      %s57 = int_to_ptr.vmem [resolvable:$true] %s56
      %59 = dma.hbm_to_vmem [thread:$0]  %s3, 256, %s57, [#allocation9]
    $region17: #{tpu_custom_call.1} parent=1 // pred_fallthru
      _
    // Predicated region
    $region18: #{tpu_custom_call.1} parent=1 // pred_check
      _
    $region19: #{tpu_custom_call.1} parent=1 // pred_check_branch
      %61 = sbr.rel (0) target = $region21
    $region20: #{tpu_custom_call.1} parent=1 // pred_region
      %s63 = ssub.s32 8192, 8192
      %64 = vsyncadd [#allocation9], %s63
      %s65 = sshll.u32 [#allocation10], 4
      %s66 = int_to_ptr.vmem [resolvable:$true] %s65
      %71 = dma.hbm_to_vmem [thread:$0]  %s4, 8192, %s66, [#allocation9], 1024, 1024, 64
    $region21: #{tpu_custom_call.1} parent=1 // pred_fallthru
      _
    // Predicated region
    $region22: #{tpu_custom_call.1} parent=1 // pred_check
      _
    $region23: #{tpu_custom_call.1} parent=1 // pred_check_branch
      %73 = sbr.rel (0) target = $region25
    $region24: #{tpu_custom_call.1} parent=1 // pred_region
      _
    $region25: #{tpu_custom_call.1} parent=1 // pred_fallthru
      _
    // Predicated region
    $region26: #{tpu_custom_call.1} parent=1 // pred_check
      _
    $region27: #{tpu_custom_call.1} parent=1 // pred_check_branch
      %75 = sbr.rel (0) target = $region29
    $region28: #{tpu_custom_call.1} parent=1 // pred_region
      %s77 = ssub.s32 16384, 16384
      %78 = vsyncadd [#allocation12], %s77
      %s79 = sshll.u32 [#allocation11], 4
      %s80 = int_to_ptr.vmem [resolvable:$true] %s79
      %85 = dma.hbm_to_vmem [thread:$0]  %s6, 16384, %s80, [#allocation12], 64, 64, 4
    $region29: #{tpu_custom_call.1} parent=1 // pred_fallthru
      _
    // Predicated region
    $region30: #{tpu_custom_call.1} parent=1 // pred_check
      _
    $region31: #{tpu_custom_call.1} parent=1 // pred_check_branch
      %87 = sbr.rel (0) target = $region33
    $region32: #{tpu_custom_call.1} parent=1 // pred_region
      _
    $region33: #{tpu_custom_call.1} parent=1 // pred_fallthru
      _
    // Predicated region
    $region34: #{tpu_custom_call.1} parent=1 // pred_check
      _
    $region35: #{tpu_custom_call.1} parent=1 // pred_check_branch
      %89 = sbr.rel (0) target = $region37
    $region36: #{tpu_custom_call.1} parent=1 // pred_region
      %90 = dma.done [#allocation3], 128
    $region37: #{tpu_custom_call.1} parent=1 // pred_fallthru
      _
    // Predicated region
    $region38: #{tpu_custom_call.1} parent=1 // pred_check
      _
    $region39: #{tpu_custom_call.1} parent=1 // pred_check_branch
      %92 = sbr.rel (0) target = $region41
    $region40: #{tpu_custom_call.1} parent=1 // pred_region
      %93 = dma.done [#allocation6], 128
    $region41: #{tpu_custom_call.1} parent=1 // pred_fallthru
      _
    // Predicated region
    $region42: #{tpu_custom_call.1} parent=1 // pred_check
      _
    $region43: #{tpu_custom_call.1} parent=1 // pred_check_branch
      %95 = sbr.rel (0) target = $region45
    $region44: #{tpu_custom_call.1} parent=1 // pred_region
      %96 = dma.done [#allocation6], 4096
    $region45: #{tpu_custom_call.1} parent=1 // pred_fallthru
      _
    // Predicated region
    $region46: #{tpu_custom_call.1} parent=1 // pred_check
      _
    $region47: #{tpu_custom_call.1} parent=1 // pred_check_branch
      %98 = sbr.rel (0) target = $region49
    $region48: #{tpu_custom_call.1} parent=1 // pred_region
      %99 = dma.done [#allocation9], 256
    $region49: #{tpu_custom_call.1} parent=1 // pred_fallthru
      _
    // Predicated region
    $region50: #{tpu_custom_call.1} parent=1 // pred_check
      _
    $region51: #{tpu_custom_call.1} parent=1 // pred_check_branch
      %101 = sbr.rel (0) target = $region53
    $region52: #{tpu_custom_call.1} parent=1 // pred_region
      %102 = dma.done [#allocation9], 8192
    $region53: #{tpu_custom_call.1} parent=1 // pred_fallthru
      _
    // Predicated region
    $region54: #{tpu_custom_call.1} parent=1 // pred_check
      _
    $region55: #{tpu_custom_call.1} parent=1 // pred_check_branch
      %104 = sbr.rel (0) target = $region57
    $region56: #{tpu_custom_call.1} parent=1 // pred_region
      %105 = dma.done [#allocation12], 16384
    $region57: #{tpu_custom_call.1} parent=1 // pred_fallthru
      _
    %v107 = vld [vmem:[#allocation2] sm:$0xff]
    %v108 = vpack.c.bf16 %v107, %v107
    %v109 = vld [vmem:[#allocation5] sm:$0xff]
    %v110 = vpack.c.bf16 %v109, %v109
    %v111 = vld [vmem:[#allocation7] sm:$0xff]
    %v112 = vld [vmem:[#allocation7 + $0x8] sm:$0xff]
    %v113 = vld [vmem:[#allocation7 + $0x10] sm:$0xff]
    %v114 = vld [vmem:[#allocation7 + $0x18] sm:$0xff]
    %v115 = vld [vmem:[#allocation7 + $0x20] sm:$0xff]
    %v116 = vld [vmem:[#allocation7 + $0x28] sm:$0xff]
    %v117 = vld [vmem:[#allocation7 + $0x30] sm:$0xff]
    %v118 = vld [vmem:[#allocation7 + $0x38] sm:$0xff]
    %v119 = vld [vmem:[#allocation7 + $0x40] sm:$0xff]
    %v120 = vld [vmem:[#allocation7 + $0x48] sm:$0xff]
    %v121 = vld [vmem:[#allocation7 + $0x50] sm:$0xff]
    %v122 = vld [vmem:[#allocation7 + $0x58] sm:$0xff]
    %v123 = vld [vmem:[#allocation7 + $0x60] sm:$0xff]
    %v124 = vld [vmem:[#allocation7 + $0x68] sm:$0xff]
    %v125 = vld [vmem:[#allocation7 + $0x70] sm:$0xff]
    %v126 = vld [vmem:[#allocation7 + $0x78] sm:$0xff]
    %v127 = vld [vmem:[#allocation7 + $0x80] sm:$0xff]
    %v128 = vld [vmem:[#allocation7 + $0x88] sm:$0xff]
    %v129 = vld [vmem:[#allocation7 + $0x90] sm:$0xff]
    %v130 = vld [vmem:[#allocation7 + $0x98] sm:$0xff]
    %v131 = vld [vmem:[#allocation7 + $0xa0] sm:$0xff]
    %v132 = vld [vmem:[#allocation7 + $0xa8] sm:$0xff]
    %v133 = vld [vmem:[#allocation7 + $0xb0] sm:$0xff]
    %v134 = vld [vmem:[#allocation7 + $0xb8] sm:$0xff]
    %v135 = vld [vmem:[#allocation7 + $0xc0] sm:$0xff]
    %v136 = vld [vmem:[#allocation7 + $0xc8] sm:$0xff]
    %v137 = vld [vmem:[#allocation7 + $0xd0] sm:$0xff]
    %v138 = vld [vmem:[#allocation7 + $0xd8] sm:$0xff]
    %v139 = vld [vmem:[#allocation7 + $0xe0] sm:$0xff]
    %v140 = vld [vmem:[#allocation7 + $0xe8] sm:$0xff]
    %v141 = vld [vmem:[#allocation7 + $0xf0] sm:$0xff]
    %v142 = vld [vmem:[#allocation7 + $0xf8] sm:$0xff]
    %v143 = vld [vmem:[#allocation8] sm:$0xff]
    %v144 = vld [vmem:[#allocation8 + $0x8] sm:$0xff]
    %v147 = vlaneseq
    %v148 = vshrl.u32 %v147, 7
    %v149 = vsub.s32 0, %v148
    %v150 = vrot.slane %v143, %v149
    %v151 = vlaneseq
    %v152 = vshrl.u32 %v151, 7
    %v153 = vsub.s32 1, %v152
    %v154 = vrot.slane %v143, %v153
    %v155 = vlaneseq
    %v156 = vshrl.u32 %v155, 7
    %v157 = vsub.s32 2, %v156
    %v158 = vrot.slane %v143, %v157
    %v159 = vlaneseq
    %v160 = vshrl.u32 %v159, 7
    %v161 = vsub.s32 3, %v160
    %v162 = vrot.slane %v143, %v161
    %v163 = vlaneseq
    %v164 = vshrl.u32 %v163, 7
    %v165 = vsub.s32 4, %v164
    %v166 = vrot.slane %v143, %v165
    %v167 = vlaneseq
    %v168 = vshrl.u32 %v167, 7
    %v169 = vsub.s32 5, %v168
    %v170 = vrot.slane %v143, %v169
    %v171 = vlaneseq
    %v172 = vshrl.u32 %v171, 7
    %v173 = vsub.s32 6, %v172
    %v174 = vrot.slane %v143, %v173
    %v175 = vlaneseq
    %v176 = vshrl.u32 %v175, 7
    %v177 = vsub.s32 7, %v176
    %v178 = vrot.slane %v143, %v177
    %v179 = vlaneseq
    %v180 = vshrl.u32 %v179, 7
    %v181 = vsub.s32 0, %v180
    %v182 = vrot.slane %v144, %v181
    %v183 = vlaneseq
    %v184 = vshrl.u32 %v183, 7
    %v185 = vsub.s32 1, %v184
    %v186 = vrot.slane %v144, %v185
    %v187 = vlaneseq
    %v188 = vshrl.u32 %v187, 7
    %v189 = vsub.s32 2, %v188
    %v190 = vrot.slane %v144, %v189
    %v191 = vlaneseq
    %v192 = vshrl.u32 %v191, 7
    %v193 = vsub.s32 3, %v192
    %v194 = vrot.slane %v144, %v193
    %v195 = vlaneseq
    %v196 = vshrl.u32 %v195, 7
    %v197 = vsub.s32 4, %v196
    %v198 = vrot.slane %v144, %v197
    %v199 = vlaneseq
    %v200 = vshrl.u32 %v199, 7
    %v201 = vsub.s32 5, %v200
    %v202 = vrot.slane %v144, %v201
    %v203 = vlaneseq
    %v204 = vshrl.u32 %v203, 7
    %v205 = vsub.s32 6, %v204
    %v206 = vrot.slane %v144, %v205
    %v207 = vlaneseq
    %v208 = vshrl.u32 %v207, 7
    %v209 = vsub.s32 7, %v208
    %v210 = vrot.slane %v144, %v209
    %v259 = vunpack.c.l.b16 %v111
    %v260 = vunpack.c.h.b16 %v111
    %v261 = vunpack.c.l.b16 %v112
    %v262 = vunpack.c.h.b16 %v112
    %v263 = vunpack.c.l.b16 %v113
    %v264 = vunpack.c.h.b16 %v113
    %v265 = vunpack.c.l.b16 %v114
    %v266 = vunpack.c.h.b16 %v114
    %v267 = vunpack.c.l.b16 %v115
    %v268 = vunpack.c.h.b16 %v115
    %v269 = vunpack.c.l.b16 %v116
    %v270 = vunpack.c.h.b16 %v116
    %v271 = vunpack.c.l.b16 %v117
    %v272 = vunpack.c.h.b16 %v117
    %v273 = vunpack.c.l.b16 %v118
    %v274 = vunpack.c.h.b16 %v118
    %v275 = vunpack.c.l.b16 %v119
    %v276 = vunpack.c.h.b16 %v119
    %v277 = vunpack.c.l.b16 %v120
    %v278 = vunpack.c.h.b16 %v120
    %v279 = vunpack.c.l.b16 %v121
    %v280 = vunpack.c.h.b16 %v121
    %v281 = vunpack.c.l.b16 %v122
    %v282 = vunpack.c.h.b16 %v122
    %v283 = vunpack.c.l.b16 %v123
    %v284 = vunpack.c.h.b16 %v123
    %v285 = vunpack.c.l.b16 %v124
    %v286 = vunpack.c.h.b16 %v124
    %v287 = vunpack.c.l.b16 %v125
    %v288 = vunpack.c.h.b16 %v125
    %v289 = vunpack.c.l.b16 %v126
    %v290 = vunpack.c.h.b16 %v126
    %v291 = vunpack.c.l.b16 %v127
    %v292 = vunpack.c.h.b16 %v127
    %v293 = vunpack.c.l.b16 %v128
    %v294 = vunpack.c.h.b16 %v128
    %v295 = vunpack.c.l.b16 %v129
    %v296 = vunpack.c.h.b16 %v129
    %v297 = vunpack.c.l.b16 %v130
    %v298 = vunpack.c.h.b16 %v130
    %v299 = vunpack.c.l.b16 %v131
    %v300 = vunpack.c.h.b16 %v131
    %v301 = vunpack.c.l.b16 %v132
    %v302 = vunpack.c.h.b16 %v132
    %v303 = vunpack.c.l.b16 %v133
    %v304 = vunpack.c.h.b16 %v133
    %v305 = vunpack.c.l.b16 %v134
    %v306 = vunpack.c.h.b16 %v134
    %v307 = vunpack.c.l.b16 %v135
    %v308 = vunpack.c.h.b16 %v135
    %v309 = vunpack.c.l.b16 %v136
    %v310 = vunpack.c.h.b16 %v136
    %v311 = vunpack.c.l.b16 %v137
    %v312 = vunpack.c.h.b16 %v137
    %v313 = vunpack.c.l.b16 %v138
    %v314 = vunpack.c.h.b16 %v138
    %v315 = vunpack.c.l.b16 %v139
    %v316 = vunpack.c.h.b16 %v139
    %v317 = vunpack.c.l.b16 %v140
    %v318 = vunpack.c.h.b16 %v140
    %v319 = vunpack.c.l.b16 %v141
    %v320 = vunpack.c.h.b16 %v141
    %v321 = vunpack.c.l.b16 %v142
    %v322 = vunpack.c.h.b16 %v142
    %v323 = vpack.c.b16 %v275, %v259
    %v324 = vpack.c.b16 %v276, %v260
    %v325 = vpack.c.b16 %v277, %v261
    %v326 = vpack.c.b16 %v278, %v262
    %v327 = vpack.c.b16 %v279, %v263
    %v328 = vpack.c.b16 %v280, %v264
    %v329 = vpack.c.b16 %v281, %v265
    %v330 = vpack.c.b16 %v282, %v266
    %v331 = vpack.c.b16 %v283, %v267
    %v332 = vpack.c.b16 %v284, %v268
    %v333 = vpack.c.b16 %v285, %v269
    %v334 = vpack.c.b16 %v286, %v270
    %v335 = vpack.c.b16 %v287, %v271
    %v336 = vpack.c.b16 %v288, %v272
    %v337 = vpack.c.b16 %v289, %v273
    %v338 = vpack.c.b16 %v290, %v274
    %v339 = vpack.c.b16 %v307, %v291
    %v340 = vpack.c.b16 %v308, %v292
    %v341 = vpack.c.b16 %v309, %v293
    %v342 = vpack.c.b16 %v310, %v294
    %v343 = vpack.c.b16 %v311, %v295
    %v344 = vpack.c.b16 %v312, %v296
    %v345 = vpack.c.b16 %v313, %v297
    %v346 = vpack.c.b16 %v314, %v298
    %v347 = vpack.c.b16 %v315, %v299
    %v348 = vpack.c.b16 %v316, %v300
    %v349 = vpack.c.b16 %v317, %v301
    %v350 = vpack.c.b16 %v318, %v302
    %v351 = vpack.c.b16 %v319, %v303
    %v352 = vpack.c.b16 %v320, %v304
    %v353 = vpack.c.b16 %v321, %v305
    %v354 = vpack.c.b16 %v322, %v306
    %vm387 = vcmask 261120
    %v389 = vsel %vm387, %v108, 0
    %391 = vmatprep.subr.bf16.mxu0 %v324
    %392 = vmatpush1.bf16.msra.mxu0 %v323
    %393 = vmatprep.subr.bf16.mxu0 %v340
    %394 = vmatpush1.bf16.msra.mxu0 %v339
    %395 = vmatprep.subr.bf16.mxu0 0
    %396 = vmatpush1.bf16.msra.mxu0 0
    %397 = vmatprep.subr.bf16.mxu0 0
    %398 = vmatpush1.bf16.msra.mxu0 0
    %399 = vmatprep.subr.bf16.mxu0 0
    %400 = vmatpush1.bf16.msra.mxu0 0
    %401 = vmatprep.subr.bf16.mxu0 0
    %402 = vmatpush1.bf16.msra.mxu0 0
    %403 = vmatprep.subr.bf16.mxu0 0
    %404 = vmatpush1.bf16.msra.mxu0 0
    %405 = vmatprep.subr.bf16.mxu0 0
    %406 = vmatpush1.bf16.msra.mxu0 0
    %407 = vmatprep.subr.bf16.mxu0 0
    %408 = vmatpush1.bf16.msra.mxu0 0
    %409 = vmatprep.subr.bf16.mxu0 0
    %410 = vmatpush1.bf16.msra.mxu0 0
    %411 = vmatprep.subr.bf16.mxu0 0
    %412 = vmatpush1.bf16.msra.mxu0 0
    %413 = vmatprep.subr.bf16.mxu0 0
    %414 = vmatpush1.bf16.msra.mxu0 0
    %415 = vmatprep.subr.bf16.mxu0 0
    %416 = vmatpush1.bf16.msra.mxu0 0
    %417 = vmatprep.subr.bf16.mxu0 0
    %418 = vmatpush1.bf16.msra.mxu0 0
    %419 = vmatprep.subr.bf16.mxu0 0
    %420 = vmatpush1.bf16.msra.mxu0 0
    %421 = vmatprep.subr.bf16.mxu0 0
    %422 = vmatpush1.bf16.msra.mxu0 0
    %423 = vmatprep.mubr.bf16.mxu0 0
    %424 = vmatmul.mubr.bf16.gmra.mrb[0].mxu0 %v389
    %v425 = vpop.f32.mrb[0].mxu0
    %v426 = vadd.f32 %v150, %v425
    %v427 = vpop.f32.mrb[0].mxu0
    %v428 = vadd.f32 %v154, %v427
    %v429 = vpop.f32.mrb[0].mxu0
    %v430 = vpop.f32.mrb[0].mxu0
    %431 = vdwg.mxu0
    %432 = vmatprep.subr.bf16.mxu0 %v326
    %433 = vmatpush1.bf16.msra.mxu0 %v325
    %434 = vmatprep.subr.bf16.mxu0 %v342
    %435 = vmatpush1.bf16.msra.mxu0 %v341
    %436 = vmatprep.subr.bf16.mxu0 0
    %437 = vmatpush1.bf16.msra.mxu0 0
    %438 = vmatprep.subr.bf16.mxu0 0
    %439 = vmatpush1.bf16.msra.mxu0 0
    %440 = vmatprep.subr.bf16.mxu0 0
    %441 = vmatpush1.bf16.msra.mxu0 0
    %442 = vmatprep.subr.bf16.mxu0 0
    %443 = vmatpush1.bf16.msra.mxu0 0
    %444 = vmatprep.subr.bf16.mxu0 0
    %445 = vmatpush1.bf16.msra.mxu0 0
    %446 = vmatprep.subr.bf16.mxu0 0
    %447 = vmatpush1.bf16.msra.mxu0 0
    %448 = vmatprep.subr.bf16.mxu0 0
    %449 = vmatpush1.bf16.msra.mxu0 0
    %450 = vmatprep.subr.bf16.mxu0 0
    %451 = vmatpush1.bf16.msra.mxu0 0
    %452 = vmatprep.subr.bf16.mxu0 0
    %453 = vmatpush1.bf16.msra.mxu0 0
    %454 = vmatprep.subr.bf16.mxu0 0
    %455 = vmatpush1.bf16.msra.mxu0 0
    %456 = vmatprep.subr.bf16.mxu0 0
    %457 = vmatpush1.bf16.msra.mxu0 0
    %458 = vmatprep.subr.bf16.mxu0 0
    %459 = vmatpush1.bf16.msra.mxu0 0
    %460 = vmatprep.subr.bf16.mxu0 0
    %461 = vmatpush1.bf16.msra.mxu0 0
    %462 = vmatprep.subr.bf16.mxu0 0
    %463 = vmatpush1.bf16.msra.mxu0 0
    %464 = vmatprep.mubr.bf16.mxu0 0
    %465 = vmatmul.mubr.bf16.gmra.mrb[0].mxu0 %v389
    %v466 = vpop.f32.mrb[0].mxu0
    %v467 = vadd.f32 %v158, %v466
    %v468 = vpop.f32.mrb[0].mxu0
    %v469 = vadd.f32 %v162, %v468
    %v470 = vpop.f32.mrb[0].mxu0
    %v471 = vpop.f32.mrb[0].mxu0
    %472 = vdwg.mxu0
    %473 = vmatprep.subr.bf16.mxu0 %v328
    %474 = vmatpush1.bf16.msra.mxu0 %v327
    %475 = vmatprep.subr.bf16.mxu0 %v344
    %476 = vmatpush1.bf16.msra.mxu0 %v343
    %477 = vmatprep.subr.bf16.mxu0 0
    %478 = vmatpush1.bf16.msra.mxu0 0
    %479 = vmatprep.subr.bf16.mxu0 0
    %480 = vmatpush1.bf16.msra.mxu0 0
    %481 = vmatprep.subr.bf16.mxu0 0
    %482 = vmatpush1.bf16.msra.mxu0 0
    %483 = vmatprep.subr.bf16.mxu0 0
    %484 = vmatpush1.bf16.msra.mxu0 0
    %485 = vmatprep.subr.bf16.mxu0 0
    %486 = vmatpush1.bf16.msra.mxu0 0
    %487 = vmatprep.subr.bf16.mxu0 0
    %488 = vmatpush1.bf16.msra.mxu0 0
    %489 = vmatprep.subr.bf16.mxu0 0
    %490 = vmatpush1.bf16.msra.mxu0 0
    %491 = vmatprep.subr.bf16.mxu0 0
    %492 = vmatpush1.bf16.msra.mxu0 0
    %493 = vmatprep.subr.bf16.mxu0 0
    %494 = vmatpush1.bf16.msra.mxu0 0
    %495 = vmatprep.subr.bf16.mxu0 0
    %496 = vmatpush1.bf16.msra.mxu0 0
    %497 = vmatprep.subr.bf16.mxu0 0
    %498 = vmatpush1.bf16.msra.mxu0 0
    %499 = vmatprep.subr.bf16.mxu0 0
    %500 = vmatpush1.bf16.msra.mxu0 0
    %501 = vmatprep.subr.bf16.mxu0 0
    %502 = vmatpush1.bf16.msra.mxu0 0
    %503 = vmatprep.subr.bf16.mxu0 0
    %504 = vmatpush1.bf16.msra.mxu0 0
    %505 = vmatprep.mubr.bf16.mxu0 0
    %506 = vmatmul.mubr.bf16.gmra.mrb[0].mxu0 %v389
    %v507 = vpop.f32.mrb[0].mxu0
    %v508 = vadd.f32 %v166, %v507
    %v509 = vpop.f32.mrb[0].mxu0
    %v510 = vadd.f32 %v170, %v509
    %v511 = vpop.f32.mrb[0].mxu0
    %v512 = vpop.f32.mrb[0].mxu0
    %513 = vdwg.mxu0
    %514 = vmatprep.subr.bf16.mxu0 %v330
    %515 = vmatpush1.bf16.msra.mxu0 %v329
    %516 = vmatprep.subr.bf16.mxu0 %v346
    %517 = vmatpush1.bf16.msra.mxu0 %v345
    %518 = vmatprep.subr.bf16.mxu0 0
    %519 = vmatpush1.bf16.msra.mxu0 0
    %520 = vmatprep.subr.bf16.mxu0 0
    %521 = vmatpush1.bf16.msra.mxu0 0
    %522 = vmatprep.subr.bf16.mxu0 0
    %523 = vmatpush1.bf16.msra.mxu0 0
    %524 = vmatprep.subr.bf16.mxu0 0
    %525 = vmatpush1.bf16.msra.mxu0 0
    %526 = vmatprep.subr.bf16.mxu0 0
    %527 = vmatpush1.bf16.msra.mxu0 0
    %528 = vmatprep.subr.bf16.mxu0 0
    %529 = vmatpush1.bf16.msra.mxu0 0
    %530 = vmatprep.subr.bf16.mxu0 0
    %531 = vmatpush1.bf16.msra.mxu0 0
    %532 = vmatprep.subr.bf16.mxu0 0
    %533 = vmatpush1.bf16.msra.mxu0 0
    %534 = vmatprep.subr.bf16.mxu0 0
    %535 = vmatpush1.bf16.msra.mxu0 0
    %536 = vmatprep.subr.bf16.mxu0 0
    %537 = vmatpush1.bf16.msra.mxu0 0
    %538 = vmatprep.subr.bf16.mxu0 0
    %539 = vmatpush1.bf16.msra.mxu0 0
    %540 = vmatprep.subr.bf16.mxu0 0
    %541 = vmatpush1.bf16.msra.mxu0 0
    %542 = vmatprep.subr.bf16.mxu0 0
    %543 = vmatpush1.bf16.msra.mxu0 0
    %544 = vmatprep.subr.bf16.mxu0 0
    %545 = vmatpush1.bf16.msra.mxu0 0
    %546 = vmatprep.mubr.bf16.mxu0 0
    %547 = vmatmul.mubr.bf16.gmra.mrb[0].mxu0 %v389
    %v548 = vpop.f32.mrb[0].mxu0
    %v549 = vadd.f32 %v174, %v548
    %v550 = vpop.f32.mrb[0].mxu0
    %v551 = vadd.f32 %v178, %v550
    %v552 = vpop.f32.mrb[0].mxu0
    %v553 = vpop.f32.mrb[0].mxu0
    %554 = vdwg.mxu0
    %555 = vmatprep.subr.bf16.mxu0 %v332
    %556 = vmatpush1.bf16.msra.mxu0 %v331
    %557 = vmatprep.subr.bf16.mxu0 %v348
    %558 = vmatpush1.bf16.msra.mxu0 %v347
    %559 = vmatprep.subr.bf16.mxu0 0
    %560 = vmatpush1.bf16.msra.mxu0 0
    %561 = vmatprep.subr.bf16.mxu0 0
    %562 = vmatpush1.bf16.msra.mxu0 0
    %563 = vmatprep.subr.bf16.mxu0 0
    %564 = vmatpush1.bf16.msra.mxu0 0
    %565 = vmatprep.subr.bf16.mxu0 0
    %566 = vmatpush1.bf16.msra.mxu0 0
    %567 = vmatprep.subr.bf16.mxu0 0
    %568 = vmatpush1.bf16.msra.mxu0 0
    %569 = vmatprep.subr.bf16.mxu0 0
    %570 = vmatpush1.bf16.msra.mxu0 0
    %571 = vmatprep.subr.bf16.mxu0 0
    %572 = vmatpush1.bf16.msra.mxu0 0
    %573 = vmatprep.subr.bf16.mxu0 0
    %574 = vmatpush1.bf16.msra.mxu0 0
    %575 = vmatprep.subr.bf16.mxu0 0
    %576 = vmatpush1.bf16.msra.mxu0 0
    %577 = vmatprep.subr.bf16.mxu0 0
    %578 = vmatpush1.bf16.msra.mxu0 0
    %579 = vmatprep.subr.bf16.mxu0 0
    %580 = vmatpush1.bf16.msra.mxu0 0
    %581 = vmatprep.subr.bf16.mxu0 0
    %582 = vmatpush1.bf16.msra.mxu0 0
    %583 = vmatprep.subr.bf16.mxu0 0
    %584 = vmatpush1.bf16.msra.mxu0 0
    %585 = vmatprep.subr.bf16.mxu0 0
    %586 = vmatpush1.bf16.msra.mxu0 0
    %587 = vmatprep.mubr.bf16.mxu0 0
    %588 = vmatmul.mubr.bf16.gmra.mrb[0].mxu0 %v389
    %v589 = vpop.f32.mrb[0].mxu0
    %v590 = vadd.f32 %v182, %v589
    %v591 = vpop.f32.mrb[0].mxu0
    %v592 = vadd.f32 %v186, %v591
    %v593 = vpop.f32.mrb[0].mxu0
    %v594 = vpop.f32.mrb[0].mxu0
    %595 = vdwg.mxu0
    %596 = vmatprep.subr.bf16.mxu0 %v334
    %597 = vmatpush1.bf16.msra.mxu0 %v333
    %598 = vmatprep.subr.bf16.mxu0 %v350
    %599 = vmatpush1.bf16.msra.mxu0 %v349
    %600 = vmatprep.subr.bf16.mxu0 0
    %601 = vmatpush1.bf16.msra.mxu0 0
    %602 = vmatprep.subr.bf16.mxu0 0
    %603 = vmatpush1.bf16.msra.mxu0 0
    %604 = vmatprep.subr.bf16.mxu0 0
    %605 = vmatpush1.bf16.msra.mxu0 0
    %606 = vmatprep.subr.bf16.mxu0 0
    %607 = vmatpush1.bf16.msra.mxu0 0
    %608 = vmatprep.subr.bf16.mxu0 0
    %609 = vmatpush1.bf16.msra.mxu0 0
    %610 = vmatprep.subr.bf16.mxu0 0
    %611 = vmatpush1.bf16.msra.mxu0 0
    %612 = vmatprep.subr.bf16.mxu0 0
    %613 = vmatpush1.bf16.msra.mxu0 0
    %614 = vmatprep.subr.bf16.mxu0 0
    %615 = vmatpush1.bf16.msra.mxu0 0
    %616 = vmatprep.subr.bf16.mxu0 0
    %617 = vmatpush1.bf16.msra.mxu0 0
    %618 = vmatprep.subr.bf16.mxu0 0
    %619 = vmatpush1.bf16.msra.mxu0 0
    %620 = vmatprep.subr.bf16.mxu0 0
    %621 = vmatpush1.bf16.msra.mxu0 0
    %622 = vmatprep.subr.bf16.mxu0 0
    %623 = vmatpush1.bf16.msra.mxu0 0
    %624 = vmatprep.subr.bf16.mxu0 0
    %625 = vmatpush1.bf16.msra.mxu0 0
    %626 = vmatprep.subr.bf16.mxu0 0
    %627 = vmatpush1.bf16.msra.mxu0 0
    %628 = vmatprep.mubr.bf16.mxu0 0
    %629 = vmatmul.mubr.bf16.gmra.mrb[0].mxu0 %v389
    %v630 = vpop.f32.mrb[0].mxu0
    %v631 = vadd.f32 %v190, %v630
    %v632 = vpop.f32.mrb[0].mxu0
    %v633 = vadd.f32 %v194, %v632
    %v634 = vpop.f32.mrb[0].mxu0
    %v635 = vpop.f32.mrb[0].mxu0
    %636 = vdwg.mxu0
    %637 = vmatprep.subr.bf16.mxu0 %v336
    %638 = vmatpush1.bf16.msra.mxu0 %v335
    %639 = vmatprep.subr.bf16.mxu0 %v352
    %640 = vmatpush1.bf16.msra.mxu0 %v351
    %641 = vmatprep.subr.bf16.mxu0 0
    %642 = vmatpush1.bf16.msra.mxu0 0
    %643 = vmatprep.subr.bf16.mxu0 0
    %644 = vmatpush1.bf16.msra.mxu0 0
    %645 = vmatprep.subr.bf16.mxu0 0
    %646 = vmatpush1.bf16.msra.mxu0 0
    %647 = vmatprep.subr.bf16.mxu0 0
    %648 = vmatpush1.bf16.msra.mxu0 0
    %649 = vmatprep.subr.bf16.mxu0 0
    %650 = vmatpush1.bf16.msra.mxu0 0
    %651 = vmatprep.subr.bf16.mxu0 0
    %652 = vmatpush1.bf16.msra.mxu0 0
    %653 = vmatprep.subr.bf16.mxu0 0
    %654 = vmatpush1.bf16.msra.mxu0 0
    %655 = vmatprep.subr.bf16.mxu0 0
    %656 = vmatpush1.bf16.msra.mxu0 0
    %657 = vmatprep.subr.bf16.mxu0 0
    %658 = vmatpush1.bf16.msra.mxu0 0
    %659 = vmatprep.subr.bf16.mxu0 0
    %660 = vmatpush1.bf16.msra.mxu0 0
    %661 = vmatprep.subr.bf16.mxu0 0
    %662 = vmatpush1.bf16.msra.mxu0 0
    %663 = vmatprep.subr.bf16.mxu0 0
    %664 = vmatpush1.bf16.msra.mxu0 0
    %665 = vmatprep.subr.bf16.mxu0 0
    %666 = vmatpush1.bf16.msra.mxu0 0
    %667 = vmatprep.subr.bf16.mxu0 0
    %668 = vmatpush1.bf16.msra.mxu0 0
    %669 = vmatprep.mubr.bf16.mxu0 0
    %670 = vmatmul.mubr.bf16.gmra.mrb[0].mxu0 %v389
    %v671 = vpop.f32.mrb[0].mxu0
    %v672 = vadd.f32 %v198, %v671
    %v673 = vpop.f32.mrb[0].mxu0
    %v674 = vadd.f32 %v202, %v673
    %v675 = vpop.f32.mrb[0].mxu0
    %v676 = vpop.f32.mrb[0].mxu0
    %677 = vdwg.mxu0
    %678 = vmatprep.subr.bf16.mxu0 %v338
    %679 = vmatpush1.bf16.msra.mxu0 %v337
    %680 = vmatprep.subr.bf16.mxu0 %v354
    %681 = vmatpush1.bf16.msra.mxu0 %v353
    %682 = vmatprep.subr.bf16.mxu0 0
    %683 = vmatpush1.bf16.msra.mxu0 0
    %684 = vmatprep.subr.bf16.mxu0 0
    %685 = vmatpush1.bf16.msra.mxu0 0
    %686 = vmatprep.subr.bf16.mxu0 0
    %687 = vmatpush1.bf16.msra.mxu0 0
    %688 = vmatprep.subr.bf16.mxu0 0
    %689 = vmatpush1.bf16.msra.mxu0 0
    %690 = vmatprep.subr.bf16.mxu0 0
    %691 = vmatpush1.bf16.msra.mxu0 0
    %692 = vmatprep.subr.bf16.mxu0 0
    %693 = vmatpush1.bf16.msra.mxu0 0
    %694 = vmatprep.subr.bf16.mxu0 0
    %695 = vmatpush1.bf16.msra.mxu0 0
    %696 = vmatprep.subr.bf16.mxu0 0
    %697 = vmatpush1.bf16.msra.mxu0 0
    %698 = vmatprep.subr.bf16.mxu0 0
    %699 = vmatpush1.bf16.msra.mxu0 0
    %700 = vmatprep.subr.bf16.mxu0 0
    %701 = vmatpush1.bf16.msra.mxu0 0
    %702 = vmatprep.subr.bf16.mxu0 0
    %703 = vmatpush1.bf16.msra.mxu0 0
    %704 = vmatprep.subr.bf16.mxu0 0
    %705 = vmatpush1.bf16.msra.mxu0 0
    %706 = vmatprep.subr.bf16.mxu0 0
    %707 = vmatpush1.bf16.msra.mxu0 0
    %708 = vmatprep.subr.bf16.mxu0 0
    %709 = vmatpush1.bf16.msra.mxu0 0
    %710 = vmatprep.mubr.bf16.mxu0 0
    %711 = vmatmul.mubr.bf16.gmra.mrb[0].mxu0 %v389
    %v712 = vpop.f32.mrb[0].mxu0
    %v713 = vadd.f32 %v206, %v712
    %v714 = vpop.f32.mrb[0].mxu0
    %v715 = vadd.f32 %v210, %v714
    %v716 = vpop.f32.mrb[0].mxu0
    %v717 = vpop.f32.mrb[0].mxu0
    %718 = vdwg.mxu0
    %v719 = vld [vmem:[#allocation10] sm:$0xff]
    %v720 = vld [vmem:[#allocation10 + $0x8] sm:$0xff]
    %v721 = vld [vmem:[#allocation10 + $0x10] sm:$0xff]
    %v722 = vld [vmem:[#allocation10 + $0x18] sm:$0xff]
    %v723 = vld [vmem:[#allocation10 + $0x20] sm:$0xff]
    %v724 = vld [vmem:[#allocation10 + $0x28] sm:$0xff]
    %v725 = vld [vmem:[#allocation10 + $0x30] sm:$0xff]
    %v726 = vld [vmem:[#allocation10 + $0x38] sm:$0xff]
    %v727 = vld [vmem:[#allocation10 + $0x40] sm:$0xff]
    %v728 = vld [vmem:[#allocation10 + $0x48] sm:$0xff]
    %v729 = vld [vmem:[#allocation10 + $0x50] sm:$0xff]
    %v730 = vld [vmem:[#allocation10 + $0x58] sm:$0xff]
    %v731 = vld [vmem:[#allocation10 + $0x60] sm:$0xff]
    %v732 = vld [vmem:[#allocation10 + $0x68] sm:$0xff]
    %v733 = vld [vmem:[#allocation10 + $0x70] sm:$0xff]
    %v734 = vld [vmem:[#allocation10 + $0x78] sm:$0xff]
    %v735 = vld [vmem:[#allocation10 + $0x80] sm:$0xff]
    %v736 = vld [vmem:[#allocation10 + $0x88] sm:$0xff]
    %v737 = vld [vmem:[#allocation10 + $0x90] sm:$0xff]
    %v738 = vld [vmem:[#allocation10 + $0x98] sm:$0xff]
    %v739 = vld [vmem:[#allocation10 + $0xa0] sm:$0xff]
    %v740 = vld [vmem:[#allocation10 + $0xa8] sm:$0xff]
    %v741 = vld [vmem:[#allocation10 + $0xb0] sm:$0xff]
    %v742 = vld [vmem:[#allocation10 + $0xb8] sm:$0xff]
    %v743 = vld [vmem:[#allocation10 + $0xc0] sm:$0xff]
    %v744 = vld [vmem:[#allocation10 + $0xc8] sm:$0xff]
    %v745 = vld [vmem:[#allocation10 + $0xd0] sm:$0xff]
    %v746 = vld [vmem:[#allocation10 + $0xd8] sm:$0xff]
    %v747 = vld [vmem:[#allocation10 + $0xe0] sm:$0xff]
    %v748 = vld [vmem:[#allocation10 + $0xe8] sm:$0xff]
    %v749 = vld [vmem:[#allocation10 + $0xf0] sm:$0xff]
    %v750 = vld [vmem:[#allocation10 + $0xf8] sm:$0xff]
    %v751 = vld [vmem:[#allocation10 + $0x100] sm:$0xff]
    %v752 = vld [vmem:[#allocation10 + $0x108] sm:$0xff]
    %v753 = vld [vmem:[#allocation10 + $0x110] sm:$0xff]
    %v754 = vld [vmem:[#allocation10 + $0x118] sm:$0xff]
    %v755 = vld [vmem:[#allocation10 + $0x120] sm:$0xff]
    %v756 = vld [vmem:[#allocation10 + $0x128] sm:$0xff]
    %v757 = vld [vmem:[#allocation10 + $0x130] sm:$0xff]
    %v758 = vld [vmem:[#allocation10 + $0x138] sm:$0xff]
    %v759 = vld [vmem:[#allocation10 + $0x140] sm:$0xff]
    %v760 = vld [vmem:[#allocation10 + $0x148] sm:$0xff]
    %v761 = vld [vmem:[#allocation10 + $0x150] sm:$0xff]
    %v762 = vld [vmem:[#allocation10 + $0x158] sm:$0xff]
    %v763 = vld [vmem:[#allocation10 + $0x160] sm:$0xff]
    %v764 = vld [vmem:[#allocation10 + $0x168] sm:$0xff]
    %v765 = vld [vmem:[#allocation10 + $0x170] sm:$0xff]
    %v766 = vld [vmem:[#allocation10 + $0x178] sm:$0xff]
    %v767 = vld [vmem:[#allocation10 + $0x180] sm:$0xff]
    %v768 = vld [vmem:[#allocation10 + $0x188] sm:$0xff]
    %v769 = vld [vmem:[#allocation10 + $0x190] sm:$0xff]
    %v770 = vld [vmem:[#allocation10 + $0x198] sm:$0xff]
    %v771 = vld [vmem:[#allocation10 + $0x1a0] sm:$0xff]
    %v772 = vld [vmem:[#allocation10 + $0x1a8] sm:$0xff]
    %v773 = vld [vmem:[#allocation10 + $0x1b0] sm:$0xff]
    %v774 = vld [vmem:[#allocation10 + $0x1b8] sm:$0xff]
    %v775 = vld [vmem:[#allocation10 + $0x1c0] sm:$0xff]
    %v776 = vld [vmem:[#allocation10 + $0x1c8] sm:$0xff]
    %v777 = vld [vmem:[#allocation10 + $0x1d0] sm:$0xff]
    %v778 = vld [vmem:[#allocation10 + $0x1d8] sm:$0xff]
    %v779 = vld [vmem:[#allocation10 + $0x1e0] sm:$0xff]
    %v780 = vld [vmem:[#allocation10 + $0x1e8] sm:$0xff]
    %v781 = vld [vmem:[#allocation10 + $0x1f0] sm:$0xff]
    %v782 = vld [vmem:[#allocation10 + $0x1f8] sm:$0xff]
    %v783 = vld [vmem:[%s5] sm:$0xff]
    %v784 = vld [vmem:[%s5 + $0x8] sm:$0xff]
    %v787 = vlaneseq
    %v788 = vshrl.u32 %v787, 7
    %v789 = vsub.s32 0, %v788
    %v790 = vrot.slane %v783, %v789
    %v791 = vlaneseq
    %v792 = vshrl.u32 %v791, 7
    %v793 = vsub.s32 1, %v792
    %v794 = vrot.slane %v783, %v793
    %v795 = vlaneseq
    %v796 = vshrl.u32 %v795, 7
    %v797 = vsub.s32 2, %v796
    %v798 = vrot.slane %v783, %v797
    %v799 = vlaneseq
    %v800 = vshrl.u32 %v799, 7
    %v801 = vsub.s32 3, %v800
    %v802 = vrot.slane %v783, %v801
    %v803 = vlaneseq
    %v804 = vshrl.u32 %v803, 7
    %v805 = vsub.s32 4, %v804
    %v806 = vrot.slane %v783, %v805
    %v807 = vlaneseq
    %v808 = vshrl.u32 %v807, 7
    %v809 = vsub.s32 5, %v808
    %v810 = vrot.slane %v783, %v809
    %v811 = vlaneseq
    %v812 = vshrl.u32 %v811, 7
    %v813 = vsub.s32 6, %v812
    %v814 = vrot.slane %v783, %v813
    %v815 = vlaneseq
    %v816 = vshrl.u32 %v815, 7
    %v817 = vsub.s32 7, %v816
    %v818 = vrot.slane %v783, %v817
    %v819 = vlaneseq
    %v820 = vshrl.u32 %v819, 7
    %v821 = vsub.s32 0, %v820
    %v822 = vrot.slane %v784, %v821
    %v823 = vlaneseq
    %v824 = vshrl.u32 %v823, 7
    %v825 = vsub.s32 1, %v824
    %v826 = vrot.slane %v784, %v825
    %v827 = vlaneseq
    %v828 = vshrl.u32 %v827, 7
    %v829 = vsub.s32 2, %v828
    %v830 = vrot.slane %v784, %v829
    %v831 = vlaneseq
    %v832 = vshrl.u32 %v831, 7
    %v833 = vsub.s32 3, %v832
    %v834 = vrot.slane %v784, %v833
    %v835 = vlaneseq
    %v836 = vshrl.u32 %v835, 7
    %v837 = vsub.s32 4, %v836
    %v838 = vrot.slane %v784, %v837
    %v839 = vlaneseq
    %v840 = vshrl.u32 %v839, 7
    %v841 = vsub.s32 5, %v840
    %v842 = vrot.slane %v784, %v841
    %v843 = vlaneseq
    %v844 = vshrl.u32 %v843, 7
    %v845 = vsub.s32 6, %v844
    %v846 = vrot.slane %v784, %v845
    %v847 = vlaneseq
    %v848 = vshrl.u32 %v847, 7
    %v849 = vsub.s32 7, %v848
    %v850 = vrot.slane %v784, %v849
    %v931 = vunpack.c.l.b16 %v719
    %v932 = vunpack.c.h.b16 %v719
    %v933 = vunpack.c.l.b16 %v720
    %v934 = vunpack.c.h.b16 %v720
    %v935 = vunpack.c.l.b16 %v721
    %v936 = vunpack.c.h.b16 %v721
    %v937 = vunpack.c.l.b16 %v722
    %v938 = vunpack.c.h.b16 %v722
    %v939 = vunpack.c.l.b16 %v723
    %v940 = vunpack.c.h.b16 %v723
    %v941 = vunpack.c.l.b16 %v724
    %v942 = vunpack.c.h.b16 %v724
    %v943 = vunpack.c.l.b16 %v725
    %v944 = vunpack.c.h.b16 %v725
    %v945 = vunpack.c.l.b16 %v726
    %v946 = vunpack.c.h.b16 %v726
    %v947 = vunpack.c.l.b16 %v727
    %v948 = vunpack.c.h.b16 %v727
    %v949 = vunpack.c.l.b16 %v728
    %v950 = vunpack.c.h.b16 %v728
    %v951 = vunpack.c.l.b16 %v729
    %v952 = vunpack.c.h.b16 %v729
    %v953 = vunpack.c.l.b16 %v730
    %v954 = vunpack.c.h.b16 %v730
    %v955 = vunpack.c.l.b16 %v731
    %v956 = vunpack.c.h.b16 %v731
    %v957 = vunpack.c.l.b16 %v732
    %v958 = vunpack.c.h.b16 %v732
    %v959 = vunpack.c.l.b16 %v733
    %v960 = vunpack.c.h.b16 %v733
    %v961 = vunpack.c.l.b16 %v734
    %v962 = vunpack.c.h.b16 %v734
    %v963 = vunpack.c.l.b16 %v735
    %v964 = vunpack.c.h.b16 %v735
    %v965 = vunpack.c.l.b16 %v736
    %v966 = vunpack.c.h.b16 %v736
    %v967 = vunpack.c.l.b16 %v737
    %v968 = vunpack.c.h.b16 %v737
    %v969 = vunpack.c.l.b16 %v738
    %v970 = vunpack.c.h.b16 %v738
    %v971 = vunpack.c.l.b16 %v739
    %v972 = vunpack.c.h.b16 %v739
    %v973 = vunpack.c.l.b16 %v740
    %v974 = vunpack.c.h.b16 %v740
    %v975 = vunpack.c.l.b16 %v741
    %v976 = vunpack.c.h.b16 %v741
    %v977 = vunpack.c.l.b16 %v742
    %v978 = vunpack.c.h.b16 %v742
    %v979 = vunpack.c.l.b16 %v743
    %v980 = vunpack.c.h.b16 %v743
    %v981 = vunpack.c.l.b16 %v744
    %v982 = vunpack.c.h.b16 %v744
    %v983 = vunpack.c.l.b16 %v745
    %v984 = vunpack.c.h.b16 %v745
    %v985 = vunpack.c.l.b16 %v746
    %v986 = vunpack.c.h.b16 %v746
    %v987 = vunpack.c.l.b16 %v747
    %v988 = vunpack.c.h.b16 %v747
    %v989 = vunpack.c.l.b16 %v748
    %v990 = vunpack.c.h.b16 %v748
    %v991 = vunpack.c.l.b16 %v749
    %v992 = vunpack.c.h.b16 %v749
    %v993 = vunpack.c.l.b16 %v750
    %v994 = vunpack.c.h.b16 %v750
    %v995 = vunpack.c.l.b16 %v751
    %v996 = vunpack.c.h.b16 %v751
    %v997 = vunpack.c.l.b16 %v752
    %v998 = vunpack.c.h.b16 %v752
    %v999 = vunpack.c.l.b16 %v753
    %v1000 = vunpack.c.h.b16 %v753
    %v1001 = vunpack.c.l.b16 %v754
    %v1002 = vunpack.c.h.b16 %v754
    %v1003 = vunpack.c.l.b16 %v755
    %v1004 = vunpack.c.h.b16 %v755
    %v1005 = vunpack.c.l.b16 %v756
    %v1006 = vunpack.c.h.b16 %v756
    %v1007 = vunpack.c.l.b16 %v757
    %v1008 = vunpack.c.h.b16 %v757
    %v1009 = vunpack.c.l.b16 %v758
    %v1010 = vunpack.c.h.b16 %v758
    %v1011 = vunpack.c.l.b16 %v759
    %v1012 = vunpack.c.h.b16 %v759
    %v1013 = vunpack.c.l.b16 %v760
    %v1014 = vunpack.c.h.b16 %v760
    %v1015 = vunpack.c.l.b16 %v761
    %v1016 = vunpack.c.h.b16 %v761
    %v1017 = vunpack.c.l.b16 %v762
    %v1018 = vunpack.c.h.b16 %v762
    %v1019 = vunpack.c.l.b16 %v763
    %v1020 = vunpack.c.h.b16 %v763
    %v1021 = vunpack.c.l.b16 %v764
    %v1022 = vunpack.c.h.b16 %v764
    %v1023 = vunpack.c.l.b16 %v765
    %v1024 = vunpack.c.h.b16 %v765
    %v1025 = vunpack.c.l.b16 %v766
    %v1026 = vunpack.c.h.b16 %v766
    %v1027 = vunpack.c.l.b16 %v767
    %v1028 = vunpack.c.h.b16 %v767
    %v1029 = vunpack.c.l.b16 %v768
    %v1030 = vunpack.c.h.b16 %v768
    %v1031 = vunpack.c.l.b16 %v769
    %v1032 = vunpack.c.h.b16 %v769
    %v1033 = vunpack.c.l.b16 %v770
    %v1034 = vunpack.c.h.b16 %v770
    %v1035 = vunpack.c.l.b16 %v771
    %v1036 = vunpack.c.h.b16 %v771
    %v1037 = vunpack.c.l.b16 %v772
    %v1038 = vunpack.c.h.b16 %v772
    %v1039 = vunpack.c.l.b16 %v773
    %v1040 = vunpack.c.h.b16 %v773
    %v1041 = vunpack.c.l.b16 %v774
    %v1042 = vunpack.c.h.b16 %v774
    %v1043 = vunpack.c.l.b16 %v775
    %v1044 = vunpack.c.h.b16 %v775
    %v1045 = vunpack.c.l.b16 %v776
    %v1046 = vunpack.c.h.b16 %v776
    %v1047 = vunpack.c.l.b16 %v777
    %v1048 = vunpack.c.h.b16 %v777
    %v1049 = vunpack.c.l.b16 %v778
    %v1050 = vunpack.c.h.b16 %v778
    %v1051 = vunpack.c.l.b16 %v779
    %v1052 = vunpack.c.h.b16 %v779
    %v1053 = vunpack.c.l.b16 %v780
    %v1054 = vunpack.c.h.b16 %v780
    %v1055 = vunpack.c.l.b16 %v781
    %v1056 = vunpack.c.h.b16 %v781
    %v1057 = vunpack.c.l.b16 %v782
    %v1058 = vunpack.c.h.b16 %v782
    %v1059 = vpack.c.b16 %v947, %v931
    %v1060 = vpack.c.b16 %v948, %v932
    %v1061 = vpack.c.b16 %v949, %v933
    %v1062 = vpack.c.b16 %v950, %v934
    %v1063 = vpack.c.b16 %v951, %v935
    %v1064 = vpack.c.b16 %v952, %v936
    %v1065 = vpack.c.b16 %v953, %v937
    %v1066 = vpack.c.b16 %v954, %v938
    %v1067 = vpack.c.b16 %v955, %v939
    %v1068 = vpack.c.b16 %v956, %v940
    %v1069 = vpack.c.b16 %v957, %v941
    %v1070 = vpack.c.b16 %v958, %v942
    %v1071 = vpack.c.b16 %v959, %v943
    %v1072 = vpack.c.b16 %v960, %v944
    %v1073 = vpack.c.b16 %v961, %v945
    %v1074 = vpack.c.b16 %v962, %v946
    %v1075 = vpack.c.b16 %v979, %v963
    %v1076 = vpack.c.b16 %v980, %v964
    %v1077 = vpack.c.b16 %v981, %v965
    %v1078 = vpack.c.b16 %v982, %v966
    %v1079 = vpack.c.b16 %v983, %v967
    %v1080 = vpack.c.b16 %v984, %v968
    %v1081 = vpack.c.b16 %v985, %v969
    %v1082 = vpack.c.b16 %v986, %v970
    %v1083 = vpack.c.b16 %v987, %v971
    %v1084 = vpack.c.b16 %v988, %v972
    %v1085 = vpack.c.b16 %v989, %v973
    %v1086 = vpack.c.b16 %v990, %v974
    %v1087 = vpack.c.b16 %v991, %v975
    %v1088 = vpack.c.b16 %v992, %v976
    %v1089 = vpack.c.b16 %v993, %v977
    %v1090 = vpack.c.b16 %v994, %v978
    %v1091 = vpack.c.b16 %v1011, %v995
    %v1092 = vpack.c.b16 %v1012, %v996
    %v1093 = vpack.c.b16 %v1013, %v997
    %v1094 = vpack.c.b16 %v1014, %v998
    %v1095 = vpack.c.b16 %v1015, %v999
    %v1096 = vpack.c.b16 %v1016, %v1000
    %v1097 = vpack.c.b16 %v1017, %v1001
    %v1098 = vpack.c.b16 %v1018, %v1002
    %v1099 = vpack.c.b16 %v1019, %v1003
    %v1100 = vpack.c.b16 %v1020, %v1004
    %v1101 = vpack.c.b16 %v1021, %v1005
    %v1102 = vpack.c.b16 %v1022, %v1006
    %v1103 = vpack.c.b16 %v1023, %v1007
    %v1104 = vpack.c.b16 %v1024, %v1008
    %v1105 = vpack.c.b16 %v1025, %v1009
    %v1106 = vpack.c.b16 %v1026, %v1010
    %v1107 = vpack.c.b16 %v1043, %v1027
    %v1108 = vpack.c.b16 %v1044, %v1028
    %v1109 = vpack.c.b16 %v1045, %v1029
    %v1110 = vpack.c.b16 %v1046, %v1030
    %v1111 = vpack.c.b16 %v1047, %v1031
    %v1112 = vpack.c.b16 %v1048, %v1032
    %v1113 = vpack.c.b16 %v1049, %v1033
    %v1114 = vpack.c.b16 %v1050, %v1034
    %v1115 = vpack.c.b16 %v1051, %v1035
    %v1116 = vpack.c.b16 %v1052, %v1036
    %v1117 = vpack.c.b16 %v1053, %v1037
    %v1118 = vpack.c.b16 %v1054, %v1038
    %v1119 = vpack.c.b16 %v1055, %v1039
    %v1120 = vpack.c.b16 %v1056, %v1040
    %v1121 = vpack.c.b16 %v1057, %v1041
    %v1122 = vpack.c.b16 %v1058, %v1042
    %vm1187 = vcmask 523264
    %v1189 = vsel %vm1187, %v110, 0
    %1191 = vmatprep.subr.bf16.mxu0 %v1060
    %1192 = vmatpush1.bf16.msra.mxu0 %v1059
    %1193 = vmatprep.subr.bf16.mxu0 %v1076
    %1194 = vmatpush1.bf16.msra.mxu0 %v1075
    %1195 = vmatprep.subr.bf16.mxu0 %v1092
    %1196 = vmatpush1.bf16.msra.mxu0 %v1091
    %1197 = vmatprep.subr.bf16.mxu0 %v1108
    %1198 = vmatpush1.bf16.msra.mxu0 %v1107
    %1199 = vmatprep.subr.bf16.mxu0 0
    %1200 = vmatpush1.bf16.msra.mxu0 0
    %1201 = vmatprep.subr.bf16.mxu0 0
    %1202 = vmatpush1.bf16.msra.mxu0 0
    %1203 = vmatprep.subr.bf16.mxu0 0
    %1204 = vmatpush1.bf16.msra.mxu0 0
    %1205 = vmatprep.subr.bf16.mxu0 0
    %1206 = vmatpush1.bf16.msra.mxu0 0
    %1207 = vmatprep.subr.bf16.mxu0 0
    %1208 = vmatpush1.bf16.msra.mxu0 0
    %1209 = vmatprep.subr.bf16.mxu0 0
    %1210 = vmatpush1.bf16.msra.mxu0 0
    %1211 = vmatprep.subr.bf16.mxu0 0
    %1212 = vmatpush1.bf16.msra.mxu0 0
    %1213 = vmatprep.subr.bf16.mxu0 0
    %1214 = vmatpush1.bf16.msra.mxu0 0
    %1215 = vmatprep.subr.bf16.mxu0 0
    %1216 = vmatpush1.bf16.msra.mxu0 0
    %1217 = vmatprep.subr.bf16.mxu0 0
    %1218 = vmatpush1.bf16.msra.mxu0 0
    %1219 = vmatprep.subr.bf16.mxu0 0
    %1220 = vmatpush1.bf16.msra.mxu0 0
    %1221 = vmatprep.subr.bf16.mxu0 0
    %1222 = vmatpush1.bf16.msra.mxu0 0
    %1223 = vmatprep.mubr.bf16.mxu0 0
    %1224 = vmatmul.mubr.bf16.gmra.mrb[0].mxu0 %v1189
    %v1225 = vpop.f32.mrb[0].mxu0
    %v1226 = vadd.f32 %v790, %v1225
    %v1227 = vpop.f32.mrb[0].mxu0
    %v1228 = vadd.f32 %v794, %v1227
    %v1229 = vpop.f32.mrb[0].mxu0
    %v1230 = vpop.f32.mrb[0].mxu0
    %1231 = vdwg.mxu0
    %1232 = vmatprep.subr.bf16.mxu0 %v1062
    %1233 = vmatpush1.bf16.msra.mxu0 %v1061
    %1234 = vmatprep.subr.bf16.mxu0 %v1078
    %1235 = vmatpush1.bf16.msra.mxu0 %v1077
    %1236 = vmatprep.subr.bf16.mxu0 %v1094
    %1237 = vmatpush1.bf16.msra.mxu0 %v1093
    %1238 = vmatprep.subr.bf16.mxu0 %v1110
    %1239 = vmatpush1.bf16.msra.mxu0 %v1109
    %1240 = vmatprep.subr.bf16.mxu0 0
    %1241 = vmatpush1.bf16.msra.mxu0 0
    %1242 = vmatprep.subr.bf16.mxu0 0
    %1243 = vmatpush1.bf16.msra.mxu0 0
    %1244 = vmatprep.subr.bf16.mxu0 0
    %1245 = vmatpush1.bf16.msra.mxu0 0
    %1246 = vmatprep.subr.bf16.mxu0 0
    %1247 = vmatpush1.bf16.msra.mxu0 0
    %1248 = vmatprep.subr.bf16.mxu0 0
    %1249 = vmatpush1.bf16.msra.mxu0 0
    %1250 = vmatprep.subr.bf16.mxu0 0
    %1251 = vmatpush1.bf16.msra.mxu0 0
    %1252 = vmatprep.subr.bf16.mxu0 0
    %1253 = vmatpush1.bf16.msra.mxu0 0
    %1254 = vmatprep.subr.bf16.mxu0 0
    %1255 = vmatpush1.bf16.msra.mxu0 0
    %1256 = vmatprep.subr.bf16.mxu0 0
    %1257 = vmatpush1.bf16.msra.mxu0 0
    %1258 = vmatprep.subr.bf16.mxu0 0
    %1259 = vmatpush1.bf16.msra.mxu0 0
    %1260 = vmatprep.subr.bf16.mxu0 0
    %1261 = vmatpush1.bf16.msra.mxu0 0
    %1262 = vmatprep.subr.bf16.mxu0 0
    %1263 = vmatpush1.bf16.msra.mxu0 0
    %1264 = vmatprep.mubr.bf16.mxu0 0
    %1265 = vmatmul.mubr.bf16.gmra.mrb[0].mxu0 %v1189
    %v1266 = vpop.f32.mrb[0].mxu0
    %v1267 = vadd.f32 %v798, %v1266
    %v1268 = vpop.f32.mrb[0].mxu0
    %v1269 = vadd.f32 %v802, %v1268
    %v1270 = vpop.f32.mrb[0].mxu0
    %v1271 = vpop.f32.mrb[0].mxu0
    %1272 = vdwg.mxu0
    %1273 = vmatprep.subr.bf16.mxu0 %v1064
    %1274 = vmatpush1.bf16.msra.mxu0 %v1063
    %1275 = vmatprep.subr.bf16.mxu0 %v1080
    %1276 = vmatpush1.bf16.msra.mxu0 %v1079
    %1277 = vmatprep.subr.bf16.mxu0 %v1096
    %1278 = vmatpush1.bf16.msra.mxu0 %v1095
    %1279 = vmatprep.subr.bf16.mxu0 %v1112
    %1280 = vmatpush1.bf16.msra.mxu0 %v1111
    %1281 = vmatprep.subr.bf16.mxu0 0
    %1282 = vmatpush1.bf16.msra.mxu0 0
    %1283 = vmatprep.subr.bf16.mxu0 0
    %1284 = vmatpush1.bf16.msra.mxu0 0
    %1285 = vmatprep.subr.bf16.mxu0 0
    %1286 = vmatpush1.bf16.msra.mxu0 0
    %1287 = vmatprep.subr.bf16.mxu0 0
    %1288 = vmatpush1.bf16.msra.mxu0 0
    %1289 = vmatprep.subr.bf16.mxu0 0
    %1290 = vmatpush1.bf16.msra.mxu0 0
    %1291 = vmatprep.subr.bf16.mxu0 0
    %1292 = vmatpush1.bf16.msra.mxu0 0
    %1293 = vmatprep.subr.bf16.mxu0 0
    %1294 = vmatpush1.bf16.msra.mxu0 0
    %1295 = vmatprep.subr.bf16.mxu0 0
    %1296 = vmatpush1.bf16.msra.mxu0 0
    %1297 = vmatprep.subr.bf16.mxu0 0
    %1298 = vmatpush1.bf16.msra.mxu0 0
    %1299 = vmatprep.subr.bf16.mxu0 0
    %1300 = vmatpush1.bf16.msra.mxu0 0
    %1301 = vmatprep.subr.bf16.mxu0 0
    %1302 = vmatpush1.bf16.msra.mxu0 0
    %1303 = vmatprep.subr.bf16.mxu0 0
    %1304 = vmatpush1.bf16.msra.mxu0 0
    %1305 = vmatprep.mubr.bf16.mxu0 0
    %1306 = vmatmul.mubr.bf16.gmra.mrb[0].mxu0 %v1189
    %v1307 = vpop.f32.mrb[0].mxu0
    %v1308 = vadd.f32 %v806, %v1307
    %v1309 = vpop.f32.mrb[0].mxu0
    %v1310 = vadd.f32 %v810, %v1309
    %v1311 = vpop.f32.mrb[0].mxu0
    %v1312 = vpop.f32.mrb[0].mxu0
    %1313 = vdwg.mxu0
    %1314 = vmatprep.subr.bf16.mxu0 %v1066
    %1315 = vmatpush1.bf16.msra.mxu0 %v1065
    %1316 = vmatprep.subr.bf16.mxu0 %v1082
    %1317 = vmatpush1.bf16.msra.mxu0 %v1081
    %1318 = vmatprep.subr.bf16.mxu0 %v1098
    %1319 = vmatpush1.bf16.msra.mxu0 %v1097
    %1320 = vmatprep.subr.bf16.mxu0 %v1114
    %1321 = vmatpush1.bf16.msra.mxu0 %v1113
    %1322 = vmatprep.subr.bf16.mxu0 0
    %1323 = vmatpush1.bf16.msra.mxu0 0
    %1324 = vmatprep.subr.bf16.mxu0 0
    %1325 = vmatpush1.bf16.msra.mxu0 0
    %1326 = vmatprep.subr.bf16.mxu0 0
    %1327 = vmatpush1.bf16.msra.mxu0 0
    %1328 = vmatprep.subr.bf16.mxu0 0
    %1329 = vmatpush1.bf16.msra.mxu0 0
    %1330 = vmatprep.subr.bf16.mxu0 0
    %1331 = vmatpush1.bf16.msra.mxu0 0
    %1332 = vmatprep.subr.bf16.mxu0 0
    %1333 = vmatpush1.bf16.msra.mxu0 0
    %1334 = vmatprep.subr.bf16.mxu0 0
    %1335 = vmatpush1.bf16.msra.mxu0 0
    %1336 = vmatprep.subr.bf16.mxu0 0
    %1337 = vmatpush1.bf16.msra.mxu0 0
    %1338 = vmatprep.subr.bf16.mxu0 0
    %1339 = vmatpush1.bf16.msra.mxu0 0
    %1340 = vmatprep.subr.bf16.mxu0 0
    %1341 = vmatpush1.bf16.msra.mxu0 0
    %1342 = vmatprep.subr.bf16.mxu0 0
    %1343 = vmatpush1.bf16.msra.mxu0 0
    %1344 = vmatprep.subr.bf16.mxu0 0
    %1345 = vmatpush1.bf16.msra.mxu0 0
    %1346 = vmatprep.mubr.bf16.mxu0 0
    %1347 = vmatmul.mubr.bf16.gmra.mrb[0].mxu0 %v1189
    %v1348 = vpop.f32.mrb[0].mxu0
    %v1349 = vadd.f32 %v814, %v1348
    %v1350 = vpop.f32.mrb[0].mxu0
    %v1351 = vadd.f32 %v818, %v1350
    %v1352 = vpop.f32.mrb[0].mxu0
    %v1353 = vpop.f32.mrb[0].mxu0
    %1354 = vdwg.mxu0
    %1355 = vmatprep.subr.bf16.mxu0 %v1068
    %1356 = vmatpush1.bf16.msra.mxu0 %v1067
    %1357 = vmatprep.subr.bf16.mxu0 %v1084
    %1358 = vmatpush1.bf16.msra.mxu0 %v1083
    %1359 = vmatprep.subr.bf16.mxu0 %v1100
    %1360 = vmatpush1.bf16.msra.mxu0 %v1099
    %1361 = vmatprep.subr.bf16.mxu0 %v1116
    %1362 = vmatpush1.bf16.msra.mxu0 %v1115
    %1363 = vmatprep.subr.bf16.mxu0 0
    %1364 = vmatpush1.bf16.msra.mxu0 0
    %1365 = vmatprep.subr.bf16.mxu0 0
    %1366 = vmatpush1.bf16.msra.mxu0 0
    %1367 = vmatprep.subr.bf16.mxu0 0
    %1368 = vmatpush1.bf16.msra.mxu0 0
    %1369 = vmatprep.subr.bf16.mxu0 0
    %1370 = vmatpush1.bf16.msra.mxu0 0
    %1371 = vmatprep.subr.bf16.mxu0 0
    %1372 = vmatpush1.bf16.msra.mxu0 0
    %1373 = vmatprep.subr.bf16.mxu0 0
    %1374 = vmatpush1.bf16.msra.mxu0 0
    %1375 = vmatprep.subr.bf16.mxu0 0
    %1376 = vmatpush1.bf16.msra.mxu0 0
    %1377 = vmatprep.subr.bf16.mxu0 0
    %1378 = vmatpush1.bf16.msra.mxu0 0
    %1379 = vmatprep.subr.bf16.mxu0 0
    %1380 = vmatpush1.bf16.msra.mxu0 0
    %1381 = vmatprep.subr.bf16.mxu0 0
    %1382 = vmatpush1.bf16.msra.mxu0 0
    %1383 = vmatprep.subr.bf16.mxu0 0
    %1384 = vmatpush1.bf16.msra.mxu0 0
    %1385 = vmatprep.subr.bf16.mxu0 0
    %1386 = vmatpush1.bf16.msra.mxu0 0
    %1387 = vmatprep.mubr.bf16.mxu0 0
    %1388 = vmatmul.mubr.bf16.gmra.mrb[0].mxu0 %v1189
    %v1389 = vpop.f32.mrb[0].mxu0
    %v1390 = vadd.f32 %v822, %v1389
    %v1391 = vpop.f32.mrb[0].mxu0
    %v1392 = vadd.f32 %v826, %v1391
    %v1393 = vpop.f32.mrb[0].mxu0
    %v1394 = vpop.f32.mrb[0].mxu0
    %1395 = vdwg.mxu0
    %1396 = vmatprep.subr.bf16.mxu0 %v1070
    %1397 = vmatpush1.bf16.msra.mxu0 %v1069
    %1398 = vmatprep.subr.bf16.mxu0 %v1086
    %1399 = vmatpush1.bf16.msra.mxu0 %v1085
    %1400 = vmatprep.subr.bf16.mxu0 %v1102
    %1401 = vmatpush1.bf16.msra.mxu0 %v1101
    %1402 = vmatprep.subr.bf16.mxu0 %v1118
    %1403 = vmatpush1.bf16.msra.mxu0 %v1117
    %1404 = vmatprep.subr.bf16.mxu0 0
    %1405 = vmatpush1.bf16.msra.mxu0 0
    %1406 = vmatprep.subr.bf16.mxu0 0
    %1407 = vmatpush1.bf16.msra.mxu0 0
    %1408 = vmatprep.subr.bf16.mxu0 0
    %1409 = vmatpush1.bf16.msra.mxu0 0
    %1410 = vmatprep.subr.bf16.mxu0 0
    %1411 = vmatpush1.bf16.msra.mxu0 0
    %1412 = vmatprep.subr.bf16.mxu0 0
    %1413 = vmatpush1.bf16.msra.mxu0 0
    %1414 = vmatprep.subr.bf16.mxu0 0
    %1415 = vmatpush1.bf16.msra.mxu0 0
    %1416 = vmatprep.subr.bf16.mxu0 0
    %1417 = vmatpush1.bf16.msra.mxu0 0
    %1418 = vmatprep.subr.bf16.mxu0 0
    %1419 = vmatpush1.bf16.msra.mxu0 0
    %1420 = vmatprep.subr.bf16.mxu0 0
    %1421 = vmatpush1.bf16.msra.mxu0 0
    %1422 = vmatprep.subr.bf16.mxu0 0
    %1423 = vmatpush1.bf16.msra.mxu0 0
    %1424 = vmatprep.subr.bf16.mxu0 0
    %1425 = vmatpush1.bf16.msra.mxu0 0
    %1426 = vmatprep.subr.bf16.mxu0 0
    %1427 = vmatpush1.bf16.msra.mxu0 0
    %1428 = vmatprep.mubr.bf16.mxu0 0
    %1429 = vmatmul.mubr.bf16.gmra.mrb[0].mxu0 %v1189
    %v1430 = vpop.f32.mrb[0].mxu0
    %v1431 = vadd.f32 %v830, %v1430
    %v1432 = vpop.f32.mrb[0].mxu0
    %v1433 = vadd.f32 %v834, %v1432
    %v1434 = vpop.f32.mrb[0].mxu0
    %v1435 = vpop.f32.mrb[0].mxu0
    %1436 = vdwg.mxu0
    %1437 = vmatprep.subr.bf16.mxu0 %v1072
    %1438 = vmatpush1.bf16.msra.mxu0 %v1071
    %1439 = vmatprep.subr.bf16.mxu0 %v1088
    %1440 = vmatpush1.bf16.msra.mxu0 %v1087
    %1441 = vmatprep.subr.bf16.mxu0 %v1104
    %1442 = vmatpush1.bf16.msra.mxu0 %v1103
    %1443 = vmatprep.subr.bf16.mxu0 %v1120
    %1444 = vmatpush1.bf16.msra.mxu0 %v1119
    %1445 = vmatprep.subr.bf16.mxu0 0
    %1446 = vmatpush1.bf16.msra.mxu0 0
    %1447 = vmatprep.subr.bf16.mxu0 0
    %1448 = vmatpush1.bf16.msra.mxu0 0
    %1449 = vmatprep.subr.bf16.mxu0 0
    %1450 = vmatpush1.bf16.msra.mxu0 0
    %1451 = vmatprep.subr.bf16.mxu0 0
    %1452 = vmatpush1.bf16.msra.mxu0 0
    %1453 = vmatprep.subr.bf16.mxu0 0
    %1454 = vmatpush1.bf16.msra.mxu0 0
    %1455 = vmatprep.subr.bf16.mxu0 0
    %1456 = vmatpush1.bf16.msra.mxu0 0
    %1457 = vmatprep.subr.bf16.mxu0 0
    %1458 = vmatpush1.bf16.msra.mxu0 0
    %1459 = vmatprep.subr.bf16.mxu0 0
    %1460 = vmatpush1.bf16.msra.mxu0 0
    %1461 = vmatprep.subr.bf16.mxu0 0
    %1462 = vmatpush1.bf16.msra.mxu0 0
    %1463 = vmatprep.subr.bf16.mxu0 0
    %1464 = vmatpush1.bf16.msra.mxu0 0
    %1465 = vmatprep.subr.bf16.mxu0 0
    %1466 = vmatpush1.bf16.msra.mxu0 0
    %1467 = vmatprep.subr.bf16.mxu0 0
    %1468 = vmatpush1.bf16.msra.mxu0 0
    %1469 = vmatprep.mubr.bf16.mxu0 0
    %1470 = vmatmul.mubr.bf16.gmra.mrb[0].mxu0 %v1189
    %v1471 = vpop.f32.mrb[0].mxu0
    %v1472 = vadd.f32 %v838, %v1471
    %v1473 = vpop.f32.mrb[0].mxu0
    %v1474 = vadd.f32 %v842, %v1473
    %v1475 = vpop.f32.mrb[0].mxu0
    %v1476 = vpop.f32.mrb[0].mxu0
    %1477 = vdwg.mxu0
    %1478 = vmatprep.subr.bf16.mxu0 %v1074
    %1479 = vmatpush1.bf16.msra.mxu0 %v1073
    %1480 = vmatprep.subr.bf16.mxu0 %v1090
    %1481 = vmatpush1.bf16.msra.mxu0 %v1089
    %1482 = vmatprep.subr.bf16.mxu0 %v1106
    %1483 = vmatpush1.bf16.msra.mxu0 %v1105
    %1484 = vmatprep.subr.bf16.mxu0 %v1122
    %1485 = vmatpush1.bf16.msra.mxu0 %v1121
    %1486 = vmatprep.subr.bf16.mxu0 0
    %1487 = vmatpush1.bf16.msra.mxu0 0
    %1488 = vmatprep.subr.bf16.mxu0 0
    %1489 = vmatpush1.bf16.msra.mxu0 0
    %1490 = vmatprep.subr.bf16.mxu0 0
    %1491 = vmatpush1.bf16.msra.mxu0 0
    %1492 = vmatprep.subr.bf16.mxu0 0
    %1493 = vmatpush1.bf16.msra.mxu0 0
    %1494 = vmatprep.subr.bf16.mxu0 0
    %1495 = vmatpush1.bf16.msra.mxu0 0
    %1496 = vmatprep.subr.bf16.mxu0 0
    %1497 = vmatpush1.bf16.msra.mxu0 0
    %1498 = vmatprep.subr.bf16.mxu0 0
    %1499 = vmatpush1.bf16.msra.mxu0 0
    %1500 = vmatprep.subr.bf16.mxu0 0
    %1501 = vmatpush1.bf16.msra.mxu0 0
    %1502 = vmatprep.subr.bf16.mxu0 0
    %1503 = vmatpush1.bf16.msra.mxu0 0
    %1504 = vmatprep.subr.bf16.mxu0 0
    %1505 = vmatpush1.bf16.msra.mxu0 0
    %1506 = vmatprep.subr.bf16.mxu0 0
    %1507 = vmatpush1.bf16.msra.mxu0 0
    %1508 = vmatprep.subr.bf16.mxu0 0
    %1509 = vmatpush1.bf16.msra.mxu0 0
    %1510 = vmatprep.mubr.bf16.mxu0 0
    %1511 = vmatmul.mubr.bf16.gmra.mrb[0].mxu0 %v1189
    %v1512 = vpop.f32.mrb[0].mxu0
    %v1513 = vadd.f32 %v846, %v1512
    %v1514 = vpop.f32.mrb[0].mxu0
    %v1515 = vadd.f32 %v850, %v1514
    %v1516 = vpop.f32.mrb[0].mxu0
    %v1517 = vpop.f32.mrb[0].mxu0
    %1518 = vdwg.mxu0
    %v1519 = vmul.f32 %v426, %v1226
    %v1520 = vmul.f32 %v428, %v1228
    %v1521 = vmul.f32 %v467, %v1267
    %v1522 = vmul.f32 %v469, %v1269
    %v1523 = vmul.f32 %v508, %v1308
    %v1524 = vmul.f32 %v510, %v1310
    %v1525 = vmul.f32 %v549, %v1349
    %v1526 = vmul.f32 %v551, %v1351
    %v1527 = vmul.f32 %v590, %v1390
    %v1528 = vmul.f32 %v592, %v1392
    %v1529 = vmul.f32 %v631, %v1431
    %v1530 = vmul.f32 %v633, %v1433
    %v1531 = vmul.f32 %v672, %v1472
    %v1532 = vmul.f32 %v674, %v1474
    %v1533 = vmul.f32 %v713, %v1513
    %v1534 = vmul.f32 %v715, %v1515
    %v1535 = vmax.f32 %v1519, 0.0
    %v1536 = vmax.f32 %v1520, 0.0
    %v1537 = vmax.f32 %v1521, 0.0
    %v1538 = vmax.f32 %v1522, 0.0
    %v1539 = vmax.f32 %v1523, 0.0
    %v1540 = vmax.f32 %v1524, 0.0
    %v1541 = vmax.f32 %v1525, 0.0
    %v1542 = vmax.f32 %v1526, 0.0
    %v1543 = vmax.f32 %v1527, 0.0
    %v1544 = vmax.f32 %v1528, 0.0
    %v1545 = vmax.f32 %v1529, 0.0
    %v1546 = vmax.f32 %v1530, 0.0
    %v1547 = vmax.f32 %v1531, 0.0
    %v1548 = vmax.f32 %v1532, 0.0
    %v1549 = vmax.f32 %v1533, 0.0
    %v1550 = vmax.f32 %v1534, 0.0
    %v1551 = vpack.c.bf16 %v1535, %v1535
    %v1552 = vpack.c.bf16 %v1536, %v1536
    %v1553 = vpack.c.bf16 %v1537, %v1537
    %v1554 = vpack.c.bf16 %v1538, %v1538
    %v1555 = vpack.c.bf16 %v1539, %v1539
    %v1556 = vpack.c.bf16 %v1540, %v1540
    %v1557 = vpack.c.bf16 %v1541, %v1541
    %v1558 = vpack.c.bf16 %v1542, %v1542
    %v1559 = vpack.c.bf16 %v1543, %v1543
    %v1560 = vpack.c.bf16 %v1544, %v1544
    %v1561 = vpack.c.bf16 %v1545, %v1545
    %v1562 = vpack.c.bf16 %v1546, %v1546
    %v1563 = vpack.c.bf16 %v1547, %v1547
    %v1564 = vpack.c.bf16 %v1548, %v1548
    %v1565 = vpack.c.bf16 %v1549, %v1549
    %v1566 = vpack.c.bf16 %v1550, %v1550
    %v1567 = vld [vmem:[#allocation11] sm:$0xf]
    %v1568 = vld [vmem:[#allocation11 + $0x4] sm:$0xf]
    %v1569 = vld [vmem:[#allocation11 + $0x8] sm:$0xf]
    %v1570 = vld [vmem:[#allocation11 + $0xc] sm:$0xf]
    %v1571 = vld [vmem:[#allocation11 + $0x10] sm:$0xf]
    %v1572 = vld [vmem:[#allocation11 + $0x14] sm:$0xf]
    %v1573 = vld [vmem:[#allocation11 + $0x18] sm:$0xf]
    %v1574 = vld [vmem:[#allocation11 + $0x1c] sm:$0xf]
    %v1575 = vld [vmem:[#allocation11 + $0x20] sm:$0xf]
    %v1576 = vld [vmem:[#allocation11 + $0x24] sm:$0xf]
    %v1577 = vld [vmem:[#allocation11 + $0x28] sm:$0xf]
    %v1578 = vld [vmem:[#allocation11 + $0x2c] sm:$0xf]
    %v1579 = vld [vmem:[#allocation11 + $0x30] sm:$0xf]
    %v1580 = vld [vmem:[#allocation11 + $0x34] sm:$0xf]
    %v1581 = vld [vmem:[#allocation11 + $0x38] sm:$0xf]
    %v1582 = vld [vmem:[#allocation11 + $0x3c] sm:$0xf]
    %v1583 = vld [vmem:[#allocation11 + $0x40] sm:$0xf]
    %v1584 = vld [vmem:[#allocation11 + $0x44] sm:$0xf]
    %v1585 = vld [vmem:[#allocation11 + $0x48] sm:$0xf]
    %v1586 = vld [vmem:[#allocation11 + $0x4c] sm:$0xf]
    %v1587 = vld [vmem:[#allocation11 + $0x50] sm:$0xf]
    %v1588 = vld [vmem:[#allocation11 + $0x54] sm:$0xf]
    %v1589 = vld [vmem:[#allocation11 + $0x58] sm:$0xf]
    %v1590 = vld [vmem:[#allocation11 + $0x5c] sm:$0xf]
    %v1591 = vld [vmem:[#allocation11 + $0x60] sm:$0xf]
    %v1592 = vld [vmem:[#allocation11 + $0x64] sm:$0xf]
    %v1593 = vld [vmem:[#allocation11 + $0x68] sm:$0xf]
    %v1594 = vld [vmem:[#allocation11 + $0x6c] sm:$0xf]
    %v1595 = vld [vmem:[#allocation11 + $0x70] sm:$0xf]
    %v1596 = vld [vmem:[#allocation11 + $0x74] sm:$0xf]
    %v1597 = vld [vmem:[#allocation11 + $0x78] sm:$0xf]
    %v1598 = vld [vmem:[#allocation11 + $0x7c] sm:$0xf]
    %v1599 = vld [vmem:[#allocation11 + $0x80] sm:$0xf]
    %v1600 = vld [vmem:[#allocation11 + $0x84] sm:$0xf]
    %v1601 = vld [vmem:[#allocation11 + $0x88] sm:$0xf]
    %v1602 = vld [vmem:[#allocation11 + $0x8c] sm:$0xf]
    %v1603 = vld [vmem:[#allocation11 + $0x90] sm:$0xf]
    %v1604 = vld [vmem:[#allocation11 + $0x94] sm:$0xf]
    %v1605 = vld [vmem:[#allocation11 + $0x98] sm:$0xf]
    %v1606 = vld [vmem:[#allocation11 + $0x9c] sm:$0xf]
    %v1607 = vld [vmem:[#allocation11 + $0xa0] sm:$0xf]
    %v1608 = vld [vmem:[#allocation11 + $0xa4] sm:$0xf]
    %v1609 = vld [vmem:[#allocation11 + $0xa8] sm:$0xf]
    %v1610 = vld [vmem:[#allocation11 + $0xac] sm:$0xf]
    %v1611 = vld [vmem:[#allocation11 + $0xb0] sm:$0xf]
    %v1612 = vld [vmem:[#allocation11 + $0xb4] sm:$0xf]
    %v1613 = vld [vmem:[#allocation11 + $0xb8] sm:$0xf]
    %v1614 = vld [vmem:[#allocation11 + $0xbc] sm:$0xf]
    %v1615 = vld [vmem:[#allocation11 + $0xc0] sm:$0xf]
    %v1616 = vld [vmem:[#allocation11 + $0xc4] sm:$0xf]
    %v1617 = vld [vmem:[#allocation11 + $0xc8] sm:$0xf]
    %v1618 = vld [vmem:[#allocation11 + $0xcc] sm:$0xf]
    %v1619 = vld [vmem:[#allocation11 + $0xd0] sm:$0xf]
    %v1620 = vld [vmem:[#allocation11 + $0xd4] sm:$0xf]
    %v1621 = vld [vmem:[#allocation11 + $0xd8] sm:$0xf]
    %v1622 = vld [vmem:[#allocation11 + $0xdc] sm:$0xf]
    %v1623 = vld [vmem:[#allocation11 + $0xe0] sm:$0xf]
    %v1624 = vld [vmem:[#allocation11 + $0xe4] sm:$0xf]
    %v1625 = vld [vmem:[#allocation11 + $0xe8] sm:$0xf]
    %v1626 = vld [vmem:[#allocation11 + $0xec] sm:$0xf]
    %v1627 = vld [vmem:[#allocation11 + $0xf0] sm:$0xf]
    %v1628 = vld [vmem:[#allocation11 + $0xf4] sm:$0xf]
    %v1629 = vld [vmem:[#allocation11 + $0xf8] sm:$0xf]
    %v1630 = vld [vmem:[#allocation11 + $0xfc] sm:$0xf]
    %v1631 = vld [vmem:[#allocation11 + $0x100] sm:$0xf]
    %v1632 = vld [vmem:[#allocation11 + $0x104] sm:$0xf]
    %v1633 = vld [vmem:[#allocation11 + $0x108] sm:$0xf]
    %v1634 = vld [vmem:[#allocation11 + $0x10c] sm:$0xf]
    %v1635 = vld [vmem:[#allocation11 + $0x110] sm:$0xf]
    %v1636 = vld [vmem:[#allocation11 + $0x114] sm:$0xf]
    %v1637 = vld [vmem:[#allocation11 + $0x118] sm:$0xf]
    %v1638 = vld [vmem:[#allocation11 + $0x11c] sm:$0xf]
    %v1639 = vld [vmem:[#allocation11 + $0x120] sm:$0xf]
    %v1640 = vld [vmem:[#allocation11 + $0x124] sm:$0xf]
    %v1641 = vld [vmem:[#allocation11 + $0x128] sm:$0xf]
    %v1642 = vld [vmem:[#allocation11 + $0x12c] sm:$0xf]
    %v1643 = vld [vmem:[#allocation11 + $0x130] sm:$0xf]
    %v1644 = vld [vmem:[#allocation11 + $0x134] sm:$0xf]
    %v1645 = vld [vmem:[#allocation11 + $0x138] sm:$0xf]
    %v1646 = vld [vmem:[#allocation11 + $0x13c] sm:$0xf]
    %v1647 = vld [vmem:[#allocation11 + $0x140] sm:$0xf]
    %v1648 = vld [vmem:[#allocation11 + $0x144] sm:$0xf]
    %v1649 = vld [vmem:[#allocation11 + $0x148] sm:$0xf]
    %v1650 = vld [vmem:[#allocation11 + $0x14c] sm:$0xf]
    %v1651 = vld [vmem:[#allocation11 + $0x150] sm:$0xf]
    %v1652 = vld [vmem:[#allocation11 + $0x154] sm:$0xf]
    %v1653 = vld [vmem:[#allocation11 + $0x158] sm:$0xf]
    %v1654 = vld [vmem:[#allocation11 + $0x15c] sm:$0xf]
    %v1655 = vld [vmem:[#allocation11 + $0x160] sm:$0xf]
    %v1656 = vld [vmem:[#allocation11 + $0x164] sm:$0xf]
    %v1657 = vld [vmem:[#allocation11 + $0x168] sm:$0xf]
    %v1658 = vld [vmem:[#allocation11 + $0x16c] sm:$0xf]
    %v1659 = vld [vmem:[#allocation11 + $0x170] sm:$0xf]
    %v1660 = vld [vmem:[#allocation11 + $0x174] sm:$0xf]
    %v1661 = vld [vmem:[#allocation11 + $0x178] sm:$0xf]
    %v1662 = vld [vmem:[#allocation11 + $0x17c] sm:$0xf]
    %v1663 = vld [vmem:[#allocation11 + $0x180] sm:$0xf]
    %v1664 = vld [vmem:[#allocation11 + $0x184] sm:$0xf]
    %v1665 = vld [vmem:[#allocation11 + $0x188] sm:$0xf]
    %v1666 = vld [vmem:[#allocation11 + $0x18c] sm:$0xf]
    %v1667 = vld [vmem:[#allocation11 + $0x190] sm:$0xf]
    %v1668 = vld [vmem:[#allocation11 + $0x194] sm:$0xf]
    %v1669 = vld [vmem:[#allocation11 + $0x198] sm:$0xf]
    %v1670 = vld [vmem:[#allocation11 + $0x19c] sm:$0xf]
    %v1671 = vld [vmem:[#allocation11 + $0x1a0] sm:$0xf]
    %v1672 = vld [vmem:[#allocation11 + $0x1a4] sm:$0xf]
    %v1673 = vld [vmem:[#allocation11 + $0x1a8] sm:$0xf]
    %v1674 = vld [vmem:[#allocation11 + $0x1ac] sm:$0xf]
    %v1675 = vld [vmem:[#allocation11 + $0x1b0] sm:$0xf]
    %v1676 = vld [vmem:[#allocation11 + $0x1b4] sm:$0xf]
    %v1677 = vld [vmem:[#allocation11 + $0x1b8] sm:$0xf]
    %v1678 = vld [vmem:[#allocation11 + $0x1bc] sm:$0xf]
    %v1679 = vld [vmem:[#allocation11 + $0x1c0] sm:$0xf]
    %v1680 = vld [vmem:[#allocation11 + $0x1c4] sm:$0xf]
    %v1681 = vld [vmem:[#allocation11 + $0x1c8] sm:$0xf]
    %v1682 = vld [vmem:[#allocation11 + $0x1cc] sm:$0xf]
    %v1683 = vld [vmem:[#allocation11 + $0x1d0] sm:$0xf]
    %v1684 = vld [vmem:[#allocation11 + $0x1d4] sm:$0xf]
    %v1685 = vld [vmem:[#allocation11 + $0x1d8] sm:$0xf]
    %v1686 = vld [vmem:[#allocation11 + $0x1dc] sm:$0xf]
    %v1687 = vld [vmem:[#allocation11 + $0x1e0] sm:$0xf]
    %v1688 = vld [vmem:[#allocation11 + $0x1e4] sm:$0xf]
    %v1689 = vld [vmem:[#allocation11 + $0x1e8] sm:$0xf]
    %v1690 = vld [vmem:[#allocation11 + $0x1ec] sm:$0xf]
    %v1691 = vld [vmem:[#allocation11 + $0x1f0] sm:$0xf]
    %v1692 = vld [vmem:[#allocation11 + $0x1f4] sm:$0xf]
    %v1693 = vld [vmem:[#allocation11 + $0x1f8] sm:$0xf]
    %v1694 = vld [vmem:[#allocation11 + $0x1fc] sm:$0xf]
    %v1695 = vld [vmem:[#allocation11 + $0x200] sm:$0xf]
    %v1696 = vld [vmem:[#allocation11 + $0x204] sm:$0xf]
    %v1697 = vld [vmem:[#allocation11 + $0x208] sm:$0xf]
    %v1698 = vld [vmem:[#allocation11 + $0x20c] sm:$0xf]
    %v1699 = vld [vmem:[#allocation11 + $0x210] sm:$0xf]
    %v1700 = vld [vmem:[#allocation11 + $0x214] sm:$0xf]
    %v1701 = vld [vmem:[#allocation11 + $0x218] sm:$0xf]
    %v1702 = vld [vmem:[#allocation11 + $0x21c] sm:$0xf]
    %v1703 = vld [vmem:[#allocation11 + $0x220] sm:$0xf]
    %v1704 = vld [vmem:[#allocation11 + $0x224] sm:$0xf]
    %v1705 = vld [vmem:[#allocation11 + $0x228] sm:$0xf]
    %v1706 = vld [vmem:[#allocation11 + $0x22c] sm:$0xf]
    %v1707 = vld [vmem:[#allocation11 + $0x230] sm:$0xf]
    %v1708 = vld [vmem:[#allocation11 + $0x234] sm:$0xf]
    %v1709 = vld [vmem:[#allocation11 + $0x238] sm:$0xf]
    %v1710 = vld [vmem:[#allocation11 + $0x23c] sm:$0xf]
    %v1711 = vld [vmem:[#allocation11 + $0x240] sm:$0xf]
    %v1712 = vld [vmem:[#allocation11 + $0x244] sm:$0xf]
    %v1713 = vld [vmem:[#allocation11 + $0x248] sm:$0xf]
    %v1714 = vld [vmem:[#allocation11 + $0x24c] sm:$0xf]
    %v1715 = vld [vmem:[#allocation11 + $0x250] sm:$0xf]
    %v1716 = vld [vmem:[#allocation11 + $0x254] sm:$0xf]
    %v1717 = vld [vmem:[#allocation11 + $0x258] sm:$0xf]
    %v1718 = vld [vmem:[#allocation11 + $0x25c] sm:$0xf]
    %v1719 = vld [vmem:[#allocation11 + $0x260] sm:$0xf]
    %v1720 = vld [vmem:[#allocation11 + $0x264] sm:$0xf]
    %v1721 = vld [vmem:[#allocation11 + $0x268] sm:$0xf]
    %v1722 = vld [vmem:[#allocation11 + $0x26c] sm:$0xf]
    %v1723 = vld [vmem:[#allocation11 + $0x270] sm:$0xf]
    %v1724 = vld [vmem:[#allocation11 + $0x274] sm:$0xf]
    %v1725 = vld [vmem:[#allocation11 + $0x278] sm:$0xf]
    %v1726 = vld [vmem:[#allocation11 + $0x27c] sm:$0xf]
    %v1727 = vld [vmem:[#allocation11 + $0x280] sm:$0xf]
    %v1728 = vld [vmem:[#allocation11 + $0x284] sm:$0xf]
    %v1729 = vld [vmem:[#allocation11 + $0x288] sm:$0xf]
    %v1730 = vld [vmem:[#allocation11 + $0x28c] sm:$0xf]
    %v1731 = vld [vmem:[#allocation11 + $0x290] sm:$0xf]
    %v1732 = vld [vmem:[#allocation11 + $0x294] sm:$0xf]
    %v1733 = vld [vmem:[#allocation11 + $0x298] sm:$0xf]
    %v1734 = vld [vmem:[#allocation11 + $0x29c] sm:$0xf]
    %v1735 = vld [vmem:[#allocation11 + $0x2a0] sm:$0xf]
    %v1736 = vld [vmem:[#allocation11 + $0x2a4] sm:$0xf]
    %v1737 = vld [vmem:[#allocation11 + $0x2a8] sm:$0xf]
    %v1738 = vld [vmem:[#allocation11 + $0x2ac] sm:$0xf]
    %v1739 = vld [vmem:[#allocation11 + $0x2b0] sm:$0xf]
    %v1740 = vld [vmem:[#allocation11 + $0x2b4] sm:$0xf]
    %v1741 = vld [vmem:[#allocation11 + $0x2b8] sm:$0xf]
    %v1742 = vld [vmem:[#allocation11 + $0x2bc] sm:$0xf]
    %v1743 = vld [vmem:[#allocation11 + $0x2c0] sm:$0xf]
    %v1744 = vld [vmem:[#allocation11 + $0x2c4] sm:$0xf]
    %v1745 = vld [vmem:[#allocation11 + $0x2c8] sm:$0xf]
    %v1746 = vld [vmem:[#allocation11 + $0x2cc] sm:$0xf]
    %v1747 = vld [vmem:[#allocation11 + $0x2d0] sm:$0xf]
    %v1748 = vld [vmem:[#allocation11 + $0x2d4] sm:$0xf]
    %v1749 = vld [vmem:[#allocation11 + $0x2d8] sm:$0xf]
    %v1750 = vld [vmem:[#allocation11 + $0x2dc] sm:$0xf]
    %v1751 = vld [vmem:[#allocation11 + $0x2e0] sm:$0xf]
    %v1752 = vld [vmem:[#allocation11 + $0x2e4] sm:$0xf]
    %v1753 = vld [vmem:[#allocation11 + $0x2e8] sm:$0xf]
    %v1754 = vld [vmem:[#allocation11 + $0x2ec] sm:$0xf]
    %v1755 = vld [vmem:[#allocation11 + $0x2f0] sm:$0xf]
    %v1756 = vld [vmem:[#allocation11 + $0x2f4] sm:$0xf]
    %v1757 = vld [vmem:[#allocation11 + $0x2f8] sm:$0xf]
    %v1758 = vld [vmem:[#allocation11 + $0x2fc] sm:$0xf]
    %v1759 = vld [vmem:[#allocation11 + $0x300] sm:$0xf]
    %v1760 = vld [vmem:[#allocation11 + $0x304] sm:$0xf]
    %v1761 = vld [vmem:[#allocation11 + $0x308] sm:$0xf]
    %v1762 = vld [vmem:[#allocation11 + $0x30c] sm:$0xf]
    %v1763 = vld [vmem:[#allocation11 + $0x310] sm:$0xf]
    %v1764 = vld [vmem:[#allocation11 + $0x314] sm:$0xf]
    %v1765 = vld [vmem:[#allocation11 + $0x318] sm:$0xf]
    %v1766 = vld [vmem:[#allocation11 + $0x31c] sm:$0xf]
    %v1767 = vld [vmem:[#allocation11 + $0x320] sm:$0xf]
    %v1768 = vld [vmem:[#allocation11 + $0x324] sm:$0xf]
    %v1769 = vld [vmem:[#allocation11 + $0x328] sm:$0xf]
    %v1770 = vld [vmem:[#allocation11 + $0x32c] sm:$0xf]
    %v1771 = vld [vmem:[#allocation11 + $0x330] sm:$0xf]
    %v1772 = vld [vmem:[#allocation11 + $0x334] sm:$0xf]
    %v1773 = vld [vmem:[#allocation11 + $0x338] sm:$0xf]
    %v1774 = vld [vmem:[#allocation11 + $0x33c] sm:$0xf]
    %v1775 = vld [vmem:[#allocation11 + $0x340] sm:$0xf]
    %v1776 = vld [vmem:[#allocation11 + $0x344] sm:$0xf]
    %v1777 = vld [vmem:[#allocation11 + $0x348] sm:$0xf]
    %v1778 = vld [vmem:[#allocation11 + $0x34c] sm:$0xf]
    %v1779 = vld [vmem:[#allocation11 + $0x350] sm:$0xf]
    %v1780 = vld [vmem:[#allocation11 + $0x354] sm:$0xf]
    %v1781 = vld [vmem:[#allocation11 + $0x358] sm:$0xf]
    %v1782 = vld [vmem:[#allocation11 + $0x35c] sm:$0xf]
    %v1783 = vld [vmem:[#allocation11 + $0x360] sm:$0xf]
    %v1784 = vld [vmem:[#allocation11 + $0x364] sm:$0xf]
    %v1785 = vld [vmem:[#allocation11 + $0x368] sm:$0xf]
    %v1786 = vld [vmem:[#allocation11 + $0x36c] sm:$0xf]
    %v1787 = vld [vmem:[#allocation11 + $0x370] sm:$0xf]
    %v1788 = vld [vmem:[#allocation11 + $0x374] sm:$0xf]
    %v1789 = vld [vmem:[#allocation11 + $0x378] sm:$0xf]
    %v1790 = vld [vmem:[#allocation11 + $0x37c] sm:$0xf]
    %v1791 = vld [vmem:[#allocation11 + $0x380] sm:$0xf]
    %v1792 = vld [vmem:[#allocation11 + $0x384] sm:$0xf]
    %v1793 = vld [vmem:[#allocation11 + $0x388] sm:$0xf]
    %v1794 = vld [vmem:[#allocation11 + $0x38c] sm:$0xf]
    %v1795 = vld [vmem:[#allocation11 + $0x390] sm:$0xf]
    %v1796 = vld [vmem:[#allocation11 + $0x394] sm:$0xf]
    %v1797 = vld [vmem:[#allocation11 + $0x398] sm:$0xf]
    %v1798 = vld [vmem:[#allocation11 + $0x39c] sm:$0xf]
    %v1799 = vld [vmem:[#allocation11 + $0x3a0] sm:$0xf]
    %v1800 = vld [vmem:[#allocation11 + $0x3a4] sm:$0xf]
    %v1801 = vld [vmem:[#allocation11 + $0x3a8] sm:$0xf]
    %v1802 = vld [vmem:[#allocation11 + $0x3ac] sm:$0xf]
    %v1803 = vld [vmem:[#allocation11 + $0x3b0] sm:$0xf]
    %v1804 = vld [vmem:[#allocation11 + $0x3b4] sm:$0xf]
    %v1805 = vld [vmem:[#allocation11 + $0x3b8] sm:$0xf]
    %v1806 = vld [vmem:[#allocation11 + $0x3bc] sm:$0xf]
    %v1807 = vld [vmem:[#allocation11 + $0x3c0] sm:$0xf]
    %v1808 = vld [vmem:[#allocation11 + $0x3c4] sm:$0xf]
    %v1809 = vld [vmem:[#allocation11 + $0x3c8] sm:$0xf]
    %v1810 = vld [vmem:[#allocation11 + $0x3cc] sm:$0xf]
    %v1811 = vld [vmem:[#allocation11 + $0x3d0] sm:$0xf]
    %v1812 = vld [vmem:[#allocation11 + $0x3d4] sm:$0xf]
    %v1813 = vld [vmem:[#allocation11 + $0x3d8] sm:$0xf]
    %v1814 = vld [vmem:[#allocation11 + $0x3dc] sm:$0xf]
    %v1815 = vld [vmem:[#allocation11 + $0x3e0] sm:$0xf]
    %v1816 = vld [vmem:[#allocation11 + $0x3e4] sm:$0xf]
    %v1817 = vld [vmem:[#allocation11 + $0x3e8] sm:$0xf]
    %v1818 = vld [vmem:[#allocation11 + $0x3ec] sm:$0xf]
    %v1819 = vld [vmem:[#allocation11 + $0x3f0] sm:$0xf]
    %v1820 = vld [vmem:[#allocation11 + $0x3f4] sm:$0xf]
    %v1821 = vld [vmem:[#allocation11 + $0x3f8] sm:$0xf]
    %v1822 = vld [vmem:[#allocation11 + $0x3fc] sm:$0xf]
    %v1823 = vld [vmem:[%s7] sm:$0x1]
    %v1825 = vlaneseq
    %v1826 = vshrl.u32 %v1825, 7
    %v1827 = vsub.s32 0, %v1826
    %v1828 = vrot.slane %v1823, %v1827
    %v2086 = vunpack.c.l.b16 %v1567
    %v2087 = vunpack.c.l.b16 %v1568
    %v2088 = vunpack.c.l.b16 %v1569
    %v2089 = vunpack.c.l.b16 %v1570
    %v2090 = vunpack.c.l.b16 %v1571
    %v2091 = vunpack.c.l.b16 %v1572
    %v2092 = vunpack.c.l.b16 %v1573
    %v2093 = vunpack.c.l.b16 %v1574
    %v2094 = vunpack.c.l.b16 %v1575
    %v2095 = vunpack.c.l.b16 %v1576
    %v2096 = vunpack.c.l.b16 %v1577
    %v2097 = vunpack.c.l.b16 %v1578
    %v2098 = vunpack.c.l.b16 %v1579
    %v2099 = vunpack.c.l.b16 %v1580
    %v2100 = vunpack.c.l.b16 %v1581
    %v2101 = vunpack.c.l.b16 %v1582
    %v2102 = vunpack.c.l.b16 %v1583
    %v2103 = vunpack.c.l.b16 %v1584
    %v2104 = vunpack.c.l.b16 %v1585
    %v2105 = vunpack.c.l.b16 %v1586
    %v2106 = vunpack.c.l.b16 %v1587
    %v2107 = vunpack.c.l.b16 %v1588
    %v2108 = vunpack.c.l.b16 %v1589
    %v2109 = vunpack.c.l.b16 %v1590
    %v2110 = vunpack.c.l.b16 %v1591
    %v2111 = vunpack.c.l.b16 %v1592
    %v2112 = vunpack.c.l.b16 %v1593
    %v2113 = vunpack.c.l.b16 %v1594
    %v2114 = vunpack.c.l.b16 %v1595
    %v2115 = vunpack.c.l.b16 %v1596
    %v2116 = vunpack.c.l.b16 %v1597
    %v2117 = vunpack.c.l.b16 %v1598
    %v2118 = vunpack.c.l.b16 %v1599
    %v2119 = vunpack.c.l.b16 %v1600
    %v2120 = vunpack.c.l.b16 %v1601
    %v2121 = vunpack.c.l.b16 %v1602
    %v2122 = vunpack.c.l.b16 %v1603
    %v2123 = vunpack.c.l.b16 %v1604
    %v2124 = vunpack.c.l.b16 %v1605
    %v2125 = vunpack.c.l.b16 %v1606
    %v2126 = vunpack.c.l.b16 %v1607
    %v2127 = vunpack.c.l.b16 %v1608
    %v2128 = vunpack.c.l.b16 %v1609
    %v2129 = vunpack.c.l.b16 %v1610
    %v2130 = vunpack.c.l.b16 %v1611
    %v2131 = vunpack.c.l.b16 %v1612
    %v2132 = vunpack.c.l.b16 %v1613
    %v2133 = vunpack.c.l.b16 %v1614
    %v2134 = vunpack.c.l.b16 %v1615
    %v2135 = vunpack.c.l.b16 %v1616
    %v2136 = vunpack.c.l.b16 %v1617
    %v2137 = vunpack.c.l.b16 %v1618
    %v2138 = vunpack.c.l.b16 %v1619
    %v2139 = vunpack.c.l.b16 %v1620
    %v2140 = vunpack.c.l.b16 %v1621
    %v2141 = vunpack.c.l.b16 %v1622
    %v2142 = vunpack.c.l.b16 %v1623
    %v2143 = vunpack.c.l.b16 %v1624
    %v2144 = vunpack.c.l.b16 %v1625
    %v2145 = vunpack.c.l.b16 %v1626
    %v2146 = vunpack.c.l.b16 %v1627
    %v2147 = vunpack.c.l.b16 %v1628
    %v2148 = vunpack.c.l.b16 %v1629
    %v2149 = vunpack.c.l.b16 %v1630
    %v2150 = vunpack.c.l.b16 %v1631
    %v2151 = vunpack.c.l.b16 %v1632
    %v2152 = vunpack.c.l.b16 %v1633
    %v2153 = vunpack.c.l.b16 %v1634
    %v2154 = vunpack.c.l.b16 %v1635
    %v2155 = vunpack.c.l.b16 %v1636
    %v2156 = vunpack.c.l.b16 %v1637
    %v2157 = vunpack.c.l.b16 %v1638
    %v2158 = vunpack.c.l.b16 %v1639
    %v2159 = vunpack.c.l.b16 %v1640
    %v2160 = vunpack.c.l.b16 %v1641
    %v2161 = vunpack.c.l.b16 %v1642
    %v2162 = vunpack.c.l.b16 %v1643
    %v2163 = vunpack.c.l.b16 %v1644
    %v2164 = vunpack.c.l.b16 %v1645
    %v2165 = vunpack.c.l.b16 %v1646
    %v2166 = vunpack.c.l.b16 %v1647
    %v2167 = vunpack.c.l.b16 %v1648
    %v2168 = vunpack.c.l.b16 %v1649
    %v2169 = vunpack.c.l.b16 %v1650
    %v2170 = vunpack.c.l.b16 %v1651
    %v2171 = vunpack.c.l.b16 %v1652
    %v2172 = vunpack.c.l.b16 %v1653
    %v2173 = vunpack.c.l.b16 %v1654
    %v2174 = vunpack.c.l.b16 %v1655
    %v2175 = vunpack.c.l.b16 %v1656
    %v2176 = vunpack.c.l.b16 %v1657
    %v2177 = vunpack.c.l.b16 %v1658
    %v2178 = vunpack.c.l.b16 %v1659
    %v2179 = vunpack.c.l.b16 %v1660
    %v2180 = vunpack.c.l.b16 %v1661
    %v2181 = vunpack.c.l.b16 %v1662
    %v2182 = vunpack.c.l.b16 %v1663
    %v2183 = vunpack.c.l.b16 %v1664
    %v2184 = vunpack.c.l.b16 %v1665
    %v2185 = vunpack.c.l.b16 %v1666
    %v2186 = vunpack.c.l.b16 %v1667
    %v2187 = vunpack.c.l.b16 %v1668
    %v2188 = vunpack.c.l.b16 %v1669
    %v2189 = vunpack.c.l.b16 %v1670
    %v2190 = vunpack.c.l.b16 %v1671
    %v2191 = vunpack.c.l.b16 %v1672
    %v2192 = vunpack.c.l.b16 %v1673
    %v2193 = vunpack.c.l.b16 %v1674
    %v2194 = vunpack.c.l.b16 %v1675
    %v2195 = vunpack.c.l.b16 %v1676
    %v2196 = vunpack.c.l.b16 %v1677
    %v2197 = vunpack.c.l.b16 %v1678
    %v2198 = vunpack.c.l.b16 %v1679
    %v2199 = vunpack.c.l.b16 %v1680
    %v2200 = vunpack.c.l.b16 %v1681
    %v2201 = vunpack.c.l.b16 %v1682
    %v2202 = vunpack.c.l.b16 %v1683
    %v2203 = vunpack.c.l.b16 %v1684
    %v2204 = vunpack.c.l.b16 %v1685
    %v2205 = vunpack.c.l.b16 %v1686
    %v2206 = vunpack.c.l.b16 %v1687
    %v2207 = vunpack.c.l.b16 %v1688
    %v2208 = vunpack.c.l.b16 %v1689
    %v2209 = vunpack.c.l.b16 %v1690
    %v2210 = vunpack.c.l.b16 %v1691
    %v2211 = vunpack.c.l.b16 %v1692
    %v2212 = vunpack.c.l.b16 %v1693
    %v2213 = vunpack.c.l.b16 %v1694
    %v2214 = vunpack.c.l.b16 %v1695
    %v2215 = vunpack.c.l.b16 %v1696
    %v2216 = vunpack.c.l.b16 %v1697
    %v2217 = vunpack.c.l.b16 %v1698
    %v2218 = vunpack.c.l.b16 %v1699
    %v2219 = vunpack.c.l.b16 %v1700
    %v2220 = vunpack.c.l.b16 %v1701
    %v2221 = vunpack.c.l.b16 %v1702
    %v2222 = vunpack.c.l.b16 %v1703
    %v2223 = vunpack.c.l.b16 %v1704
    %v2224 = vunpack.c.l.b16 %v1705
    %v2225 = vunpack.c.l.b16 %v1706
    %v2226 = vunpack.c.l.b16 %v1707
    %v2227 = vunpack.c.l.b16 %v1708
    %v2228 = vunpack.c.l.b16 %v1709
    %v2229 = vunpack.c.l.b16 %v1710
    %v2230 = vunpack.c.l.b16 %v1711
    %v2231 = vunpack.c.l.b16 %v1712
    %v2232 = vunpack.c.l.b16 %v1713
    %v2233 = vunpack.c.l.b16 %v1714
    %v2234 = vunpack.c.l.b16 %v1715
    %v2235 = vunpack.c.l.b16 %v1716
    %v2236 = vunpack.c.l.b16 %v1717
    %v2237 = vunpack.c.l.b16 %v1718
    %v2238 = vunpack.c.l.b16 %v1719
    %v2239 = vunpack.c.l.b16 %v1720
    %v2240 = vunpack.c.l.b16 %v1721
    %v2241 = vunpack.c.l.b16 %v1722
    %v2242 = vunpack.c.l.b16 %v1723
    %v2243 = vunpack.c.l.b16 %v1724
    %v2244 = vunpack.c.l.b16 %v1725
    %v2245 = vunpack.c.l.b16 %v1726
    %v2246 = vunpack.c.l.b16 %v1727
    %v2247 = vunpack.c.l.b16 %v1728
    %v2248 = vunpack.c.l.b16 %v1729
    %v2249 = vunpack.c.l.b16 %v1730
    %v2250 = vunpack.c.l.b16 %v1731
    %v2251 = vunpack.c.l.b16 %v1732
    %v2252 = vunpack.c.l.b16 %v1733
    %v2253 = vunpack.c.l.b16 %v1734
    %v2254 = vunpack.c.l.b16 %v1735
    %v2255 = vunpack.c.l.b16 %v1736
    %v2256 = vunpack.c.l.b16 %v1737
    %v2257 = vunpack.c.l.b16 %v1738
    %v2258 = vunpack.c.l.b16 %v1739
    %v2259 = vunpack.c.l.b16 %v1740
    %v2260 = vunpack.c.l.b16 %v1741
    %v2261 = vunpack.c.l.b16 %v1742
    %v2262 = vunpack.c.l.b16 %v1743
    %v2263 = vunpack.c.l.b16 %v1744
    %v2264 = vunpack.c.l.b16 %v1745
    %v2265 = vunpack.c.l.b16 %v1746
    %v2266 = vunpack.c.l.b16 %v1747
    %v2267 = vunpack.c.l.b16 %v1748
    %v2268 = vunpack.c.l.b16 %v1749
    %v2269 = vunpack.c.l.b16 %v1750
    %v2270 = vunpack.c.l.b16 %v1751
    %v2271 = vunpack.c.l.b16 %v1752
    %v2272 = vunpack.c.l.b16 %v1753
    %v2273 = vunpack.c.l.b16 %v1754
    %v2274 = vunpack.c.l.b16 %v1755
    %v2275 = vunpack.c.l.b16 %v1756
    %v2276 = vunpack.c.l.b16 %v1757
    %v2277 = vunpack.c.l.b16 %v1758
    %v2278 = vunpack.c.l.b16 %v1759
    %v2279 = vunpack.c.l.b16 %v1760
    %v2280 = vunpack.c.l.b16 %v1761
    %v2281 = vunpack.c.l.b16 %v1762
    %v2282 = vunpack.c.l.b16 %v1763
    %v2283 = vunpack.c.l.b16 %v1764
    %v2284 = vunpack.c.l.b16 %v1765
    %v2285 = vunpack.c.l.b16 %v1766
    %v2286 = vunpack.c.l.b16 %v1767
    %v2287 = vunpack.c.l.b16 %v1768
    %v2288 = vunpack.c.l.b16 %v1769
    %v2289 = vunpack.c.l.b16 %v1770
    %v2290 = vunpack.c.l.b16 %v1771
    %v2291 = vunpack.c.l.b16 %v1772
    %v2292 = vunpack.c.l.b16 %v1773
    %v2293 = vunpack.c.l.b16 %v1774
    %v2294 = vunpack.c.l.b16 %v1775
    %v2295 = vunpack.c.l.b16 %v1776
    %v2296 = vunpack.c.l.b16 %v1777
    %v2297 = vunpack.c.l.b16 %v1778
    %v2298 = vunpack.c.l.b16 %v1779
    %v2299 = vunpack.c.l.b16 %v1780
    %v2300 = vunpack.c.l.b16 %v1781
    %v2301 = vunpack.c.l.b16 %v1782
    %v2302 = vunpack.c.l.b16 %v1783
    %v2303 = vunpack.c.l.b16 %v1784
    %v2304 = vunpack.c.l.b16 %v1785
    %v2305 = vunpack.c.l.b16 %v1786
    %v2306 = vunpack.c.l.b16 %v1787
    %v2307 = vunpack.c.l.b16 %v1788
    %v2308 = vunpack.c.l.b16 %v1789
    %v2309 = vunpack.c.l.b16 %v1790
    %v2310 = vunpack.c.l.b16 %v1791
    %v2311 = vunpack.c.l.b16 %v1792
    %v2312 = vunpack.c.l.b16 %v1793
    %v2313 = vunpack.c.l.b16 %v1794
    %v2314 = vunpack.c.l.b16 %v1795
    %v2315 = vunpack.c.l.b16 %v1796
    %v2316 = vunpack.c.l.b16 %v1797
    %v2317 = vunpack.c.l.b16 %v1798
    %v2318 = vunpack.c.l.b16 %v1799
    %v2319 = vunpack.c.l.b16 %v1800
    %v2320 = vunpack.c.l.b16 %v1801
    %v2321 = vunpack.c.l.b16 %v1802
    %v2322 = vunpack.c.l.b16 %v1803
    %v2323 = vunpack.c.l.b16 %v1804
    %v2324 = vunpack.c.l.b16 %v1805
    %v2325 = vunpack.c.l.b16 %v1806
    %v2326 = vunpack.c.l.b16 %v1807
    %v2327 = vunpack.c.l.b16 %v1808
    %v2328 = vunpack.c.l.b16 %v1809
    %v2329 = vunpack.c.l.b16 %v1810
    %v2330 = vunpack.c.l.b16 %v1811
    %v2331 = vunpack.c.l.b16 %v1812
    %v2332 = vunpack.c.l.b16 %v1813
    %v2333 = vunpack.c.l.b16 %v1814
    %v2334 = vunpack.c.l.b16 %v1815
    %v2335 = vunpack.c.l.b16 %v1816
    %v2336 = vunpack.c.l.b16 %v1817
    %v2337 = vunpack.c.l.b16 %v1818
    %v2338 = vunpack.c.l.b16 %v1819
    %v2339 = vunpack.c.l.b16 %v1820
    %v2340 = vunpack.c.l.b16 %v1821
    %v2341 = vunpack.c.l.b16 %v1822
    %v2342 = vpack.c.b16 %v2087, %v2086
    %v2343 = vpack.c.b16 %v2089, %v2088
    %v2344 = vpack.c.b16 %v2091, %v2090
    %v2345 = vpack.c.b16 %v2093, %v2092
    %v2346 = vpack.c.b16 %v2095, %v2094
    %v2347 = vpack.c.b16 %v2097, %v2096
    %v2348 = vpack.c.b16 %v2099, %v2098
    %v2349 = vpack.c.b16 %v2101, %v2100
    %v2350 = vpack.c.b16 %v2103, %v2102
    %v2351 = vpack.c.b16 %v2105, %v2104
    %v2352 = vpack.c.b16 %v2107, %v2106
    %v2353 = vpack.c.b16 %v2109, %v2108
    %v2354 = vpack.c.b16 %v2111, %v2110
    %v2355 = vpack.c.b16 %v2113, %v2112
    %v2356 = vpack.c.b16 %v2115, %v2114
    %v2357 = vpack.c.b16 %v2117, %v2116
    %v2358 = vpack.c.b16 %v2119, %v2118
    %v2359 = vpack.c.b16 %v2121, %v2120
    %v2360 = vpack.c.b16 %v2123, %v2122
    %v2361 = vpack.c.b16 %v2125, %v2124
    %v2362 = vpack.c.b16 %v2127, %v2126
    %v2363 = vpack.c.b16 %v2129, %v2128
    %v2364 = vpack.c.b16 %v2131, %v2130
    %v2365 = vpack.c.b16 %v2133, %v2132
    %v2366 = vpack.c.b16 %v2135, %v2134
    %v2367 = vpack.c.b16 %v2137, %v2136
    %v2368 = vpack.c.b16 %v2139, %v2138
    %v2369 = vpack.c.b16 %v2141, %v2140
    %v2370 = vpack.c.b16 %v2143, %v2142
    %v2371 = vpack.c.b16 %v2145, %v2144
    %v2372 = vpack.c.b16 %v2147, %v2146
    %v2373 = vpack.c.b16 %v2149, %v2148
    %v2374 = vpack.c.b16 %v2151, %v2150
    %v2375 = vpack.c.b16 %v2153, %v2152
    %v2376 = vpack.c.b16 %v2155, %v2154
    %v2377 = vpack.c.b16 %v2157, %v2156
    %v2378 = vpack.c.b16 %v2159, %v2158
    %v2379 = vpack.c.b16 %v2161, %v2160
    %v2380 = vpack.c.b16 %v2163, %v2162
    %v2381 = vpack.c.b16 %v2165, %v2164
    %v2382 = vpack.c.b16 %v2167, %v2166
    %v2383 = vpack.c.b16 %v2169, %v2168
    %v2384 = vpack.c.b16 %v2171, %v2170
    %v2385 = vpack.c.b16 %v2173, %v2172
    %v2386 = vpack.c.b16 %v2175, %v2174
    %v2387 = vpack.c.b16 %v2177, %v2176
    %v2388 = vpack.c.b16 %v2179, %v2178
    %v2389 = vpack.c.b16 %v2181, %v2180
    %v2390 = vpack.c.b16 %v2183, %v2182
    %v2391 = vpack.c.b16 %v2185, %v2184
    %v2392 = vpack.c.b16 %v2187, %v2186
    %v2393 = vpack.c.b16 %v2189, %v2188
    %v2394 = vpack.c.b16 %v2191, %v2190
    %v2395 = vpack.c.b16 %v2193, %v2192
    %v2396 = vpack.c.b16 %v2195, %v2194
    %v2397 = vpack.c.b16 %v2197, %v2196
    %v2398 = vpack.c.b16 %v2199, %v2198
    %v2399 = vpack.c.b16 %v2201, %v2200
    %v2400 = vpack.c.b16 %v2203, %v2202
    %v2401 = vpack.c.b16 %v2205, %v2204
    %v2402 = vpack.c.b16 %v2207, %v2206
    %v2403 = vpack.c.b16 %v2209, %v2208
    %v2404 = vpack.c.b16 %v2211, %v2210
    %v2405 = vpack.c.b16 %v2213, %v2212
    %v2406 = vpack.c.b16 %v2215, %v2214
    %v2407 = vpack.c.b16 %v2217, %v2216
    %v2408 = vpack.c.b16 %v2219, %v2218
    %v2409 = vpack.c.b16 %v2221, %v2220
    %v2410 = vpack.c.b16 %v2223, %v2222
    %v2411 = vpack.c.b16 %v2225, %v2224
    %v2412 = vpack.c.b16 %v2227, %v2226
    %v2413 = vpack.c.b16 %v2229, %v2228
    %v2414 = vpack.c.b16 %v2231, %v2230
    %v2415 = vpack.c.b16 %v2233, %v2232
    %v2416 = vpack.c.b16 %v2235, %v2234
    %v2417 = vpack.c.b16 %v2237, %v2236
    %v2418 = vpack.c.b16 %v2239, %v2238
    %v2419 = vpack.c.b16 %v2241, %v2240
    %v2420 = vpack.c.b16 %v2243, %v2242
    %v2421 = vpack.c.b16 %v2245, %v2244
    %v2422 = vpack.c.b16 %v2247, %v2246
    %v2423 = vpack.c.b16 %v2249, %v2248
    %v2424 = vpack.c.b16 %v2251, %v2250
    %v2425 = vpack.c.b16 %v2253, %v2252
    %v2426 = vpack.c.b16 %v2255, %v2254
    %v2427 = vpack.c.b16 %v2257, %v2256
    %v2428 = vpack.c.b16 %v2259, %v2258
    %v2429 = vpack.c.b16 %v2261, %v2260
    %v2430 = vpack.c.b16 %v2263, %v2262
    %v2431 = vpack.c.b16 %v2265, %v2264
    %v2432 = vpack.c.b16 %v2267, %v2266
    %v2433 = vpack.c.b16 %v2269, %v2268
    %v2434 = vpack.c.b16 %v2271, %v2270
    %v2435 = vpack.c.b16 %v2273, %v2272
    %v2436 = vpack.c.b16 %v2275, %v2274
    %v2437 = vpack.c.b16 %v2277, %v2276
    %v2438 = vpack.c.b16 %v2279, %v2278
    %v2439 = vpack.c.b16 %v2281, %v2280
    %v2440 = vpack.c.b16 %v2283, %v2282
    %v2441 = vpack.c.b16 %v2285, %v2284
    %v2442 = vpack.c.b16 %v2287, %v2286
    %v2443 = vpack.c.b16 %v2289, %v2288
    %v2444 = vpack.c.b16 %v2291, %v2290
    %v2445 = vpack.c.b16 %v2293, %v2292
    %v2446 = vpack.c.b16 %v2295, %v2294
    %v2447 = vpack.c.b16 %v2297, %v2296
    %v2448 = vpack.c.b16 %v2299, %v2298
    %v2449 = vpack.c.b16 %v2301, %v2300
    %v2450 = vpack.c.b16 %v2303, %v2302
    %v2451 = vpack.c.b16 %v2305, %v2304
    %v2452 = vpack.c.b16 %v2307, %v2306
    %v2453 = vpack.c.b16 %v2309, %v2308
    %v2454 = vpack.c.b16 %v2311, %v2310
    %v2455 = vpack.c.b16 %v2313, %v2312
    %v2456 = vpack.c.b16 %v2315, %v2314
    %v2457 = vpack.c.b16 %v2317, %v2316
    %v2458 = vpack.c.b16 %v2319, %v2318
    %v2459 = vpack.c.b16 %v2321, %v2320
    %v2460 = vpack.c.b16 %v2323, %v2322
    %v2461 = vpack.c.b16 %v2325, %v2324
    %v2462 = vpack.c.b16 %v2327, %v2326
    %v2463 = vpack.c.b16 %v2329, %v2328
    %v2464 = vpack.c.b16 %v2331, %v2330
    %v2465 = vpack.c.b16 %v2333, %v2332
    %v2466 = vpack.c.b16 %v2335, %v2334
    %v2467 = vpack.c.b16 %v2337, %v2336
    %v2468 = vpack.c.b16 %v2339, %v2338
    %v2469 = vpack.c.b16 %v2341, %v2340
    %2598 = vmatprep.subr.bf16.mxu0 0
    %2599 = vmatpush1.bf16.msra.mxu0 %v2342
    %2600 = vmatprep.subr.bf16.mxu0 0
    %2601 = vmatpush1.bf16.msra.mxu0 %v2343
    %2602 = vmatprep.subr.bf16.mxu0 0
    %2603 = vmatpush1.bf16.msra.mxu0 %v2344
    %2604 = vmatprep.subr.bf16.mxu0 0
    %2605 = vmatpush1.bf16.msra.mxu0 %v2345
    %2606 = vmatprep.subr.bf16.mxu0 0
    %2607 = vmatpush1.bf16.msra.mxu0 %v2346
    %2608 = vmatprep.subr.bf16.mxu0 0
    %2609 = vmatpush1.bf16.msra.mxu0 %v2347
    %2610 = vmatprep.subr.bf16.mxu0 0
    %2611 = vmatpush1.bf16.msra.mxu0 %v2348
    %2612 = vmatprep.subr.bf16.mxu0 0
    %2613 = vmatpush1.bf16.msra.mxu0 %v2349
    %2614 = vmatprep.subr.bf16.mxu0 0
    %2615 = vmatpush1.bf16.msra.mxu0 %v2350
    %2616 = vmatprep.subr.bf16.mxu0 0
    %2617 = vmatpush1.bf16.msra.mxu0 %v2351
    %2618 = vmatprep.subr.bf16.mxu0 0
    %2619 = vmatpush1.bf16.msra.mxu0 %v2352
    %2620 = vmatprep.subr.bf16.mxu0 0
    %2621 = vmatpush1.bf16.msra.mxu0 %v2353
    %2622 = vmatprep.subr.bf16.mxu0 0
    %2623 = vmatpush1.bf16.msra.mxu0 %v2354
    %2624 = vmatprep.subr.bf16.mxu0 0
    %2625 = vmatpush1.bf16.msra.mxu0 %v2355
    %2626 = vmatprep.subr.bf16.mxu0 0
    %2627 = vmatpush1.bf16.msra.mxu0 %v2356
    %2628 = vmatprep.subr.bf16.mxu0 0
    %2629 = vmatpush1.bf16.msra.mxu0 %v2357
    %2630 = vmatprep.mubr.bf16.mxu0 %v1552
    %2631 = vmatmul.mubr.bf16.gmra.mrb[0].mxu0 %v1551
    %v2632 = vpop.f32.mrb[0].mxu0
    %v2633 = vadd.f32 %v1828, %v2632
    %v2634 = vpop.f32.mrb[0].mxu0
    %v2635 = vpop.f32.mrb[0].mxu0
    %v2636 = vpop.f32.mrb[0].mxu0
    %2637 = vdwg.mxu0
    %2638 = vmatprep.subr.bf16.mxu0 0
    %2639 = vmatpush1.bf16.msra.mxu0 %v2358
    %2640 = vmatprep.subr.bf16.mxu0 0
    %2641 = vmatpush1.bf16.msra.mxu0 %v2359
    %2642 = vmatprep.subr.bf16.mxu0 0
    %2643 = vmatpush1.bf16.msra.mxu0 %v2360
    %2644 = vmatprep.subr.bf16.mxu0 0
    %2645 = vmatpush1.bf16.msra.mxu0 %v2361
    %2646 = vmatprep.subr.bf16.mxu0 0
    %2647 = vmatpush1.bf16.msra.mxu0 %v2362
    %2648 = vmatprep.subr.bf16.mxu0 0
    %2649 = vmatpush1.bf16.msra.mxu0 %v2363
    %2650 = vmatprep.subr.bf16.mxu0 0
    %2651 = vmatpush1.bf16.msra.mxu0 %v2364
    %2652 = vmatprep.subr.bf16.mxu0 0
    %2653 = vmatpush1.bf16.msra.mxu0 %v2365
    %2654 = vmatprep.subr.bf16.mxu0 0
    %2655 = vmatpush1.bf16.msra.mxu0 %v2366
    %2656 = vmatprep.subr.bf16.mxu0 0
    %2657 = vmatpush1.bf16.msra.mxu0 %v2367
    %2658 = vmatprep.subr.bf16.mxu0 0
    %2659 = vmatpush1.bf16.msra.mxu0 %v2368
    %2660 = vmatprep.subr.bf16.mxu0 0
    %2661 = vmatpush1.bf16.msra.mxu0 %v2369
    %2662 = vmatprep.subr.bf16.mxu0 0
    %2663 = vmatpush1.bf16.msra.mxu0 %v2370
    %2664 = vmatprep.subr.bf16.mxu0 0
    %2665 = vmatpush1.bf16.msra.mxu0 %v2371
    %2666 = vmatprep.subr.bf16.mxu0 0
    %2667 = vmatpush1.bf16.msra.mxu0 %v2372
    %2668 = vmatprep.subr.bf16.mxu0 0
    %2669 = vmatpush1.bf16.msra.mxu0 %v2373
    %2670 = vmatprep.mubr.bf16.mxu0 %v1554
    %2671 = vmatmul.mubr.bf16.gmra.mrb[0].mxu0 %v1553
    %v2672 = vpop.f32.mrb[0].mxu0
    %v2673 = vadd.f32 %v2633, %v2672
    %v2674 = vpop.f32.mrb[0].mxu0
    %v2675 = vpop.f32.mrb[0].mxu0
    %v2676 = vpop.f32.mrb[0].mxu0
    %2677 = vdwg.mxu0
    %2678 = vmatprep.subr.bf16.mxu0 0
    %2679 = vmatpush1.bf16.msra.mxu0 %v2374
    %2680 = vmatprep.subr.bf16.mxu0 0
    %2681 = vmatpush1.bf16.msra.mxu0 %v2375
    %2682 = vmatprep.subr.bf16.mxu0 0
    %2683 = vmatpush1.bf16.msra.mxu0 %v2376
    %2684 = vmatprep.subr.bf16.mxu0 0
    %2685 = vmatpush1.bf16.msra.mxu0 %v2377
    %2686 = vmatprep.subr.bf16.mxu0 0
    %2687 = vmatpush1.bf16.msra.mxu0 %v2378
    %2688 = vmatprep.subr.bf16.mxu0 0
    %2689 = vmatpush1.bf16.msra.mxu0 %v2379
    %2690 = vmatprep.subr.bf16.mxu0 0
    %2691 = vmatpush1.bf16.msra.mxu0 %v2380
    %2692 = vmatprep.subr.bf16.mxu0 0
    %2693 = vmatpush1.bf16.msra.mxu0 %v2381
    %2694 = vmatprep.subr.bf16.mxu0 0
    %2695 = vmatpush1.bf16.msra.mxu0 %v2382
    %2696 = vmatprep.subr.bf16.mxu0 0
    %2697 = vmatpush1.bf16.msra.mxu0 %v2383
    %2698 = vmatprep.subr.bf16.mxu0 0
    %2699 = vmatpush1.bf16.msra.mxu0 %v2384
    %2700 = vmatprep.subr.bf16.mxu0 0
    %2701 = vmatpush1.bf16.msra.mxu0 %v2385
    %2702 = vmatprep.subr.bf16.mxu0 0
    %2703 = vmatpush1.bf16.msra.mxu0 %v2386
    %2704 = vmatprep.subr.bf16.mxu0 0
    %2705 = vmatpush1.bf16.msra.mxu0 %v2387
    %2706 = vmatprep.subr.bf16.mxu0 0
    %2707 = vmatpush1.bf16.msra.mxu0 %v2388
    %2708 = vmatprep.subr.bf16.mxu0 0
    %2709 = vmatpush1.bf16.msra.mxu0 %v2389
    %2710 = vmatprep.mubr.bf16.mxu0 %v1556
    %2711 = vmatmul.mubr.bf16.gmra.mrb[0].mxu0 %v1555
    %v2712 = vpop.f32.mrb[0].mxu0
    %v2713 = vadd.f32 %v2673, %v2712
    %v2714 = vpop.f32.mrb[0].mxu0
    %v2715 = vpop.f32.mrb[0].mxu0
    %v2716 = vpop.f32.mrb[0].mxu0
    %2717 = vdwg.mxu0
    %2718 = vmatprep.subr.bf16.mxu0 0
    %2719 = vmatpush1.bf16.msra.mxu0 %v2390
    %2720 = vmatprep.subr.bf16.mxu0 0
    %2721 = vmatpush1.bf16.msra.mxu0 %v2391
    %2722 = vmatprep.subr.bf16.mxu0 0
    %2723 = vmatpush1.bf16.msra.mxu0 %v2392
    %2724 = vmatprep.subr.bf16.mxu0 0
    %2725 = vmatpush1.bf16.msra.mxu0 %v2393
    %2726 = vmatprep.subr.bf16.mxu0 0
    %2727 = vmatpush1.bf16.msra.mxu0 %v2394
    %2728 = vmatprep.subr.bf16.mxu0 0
    %2729 = vmatpush1.bf16.msra.mxu0 %v2395
    %2730 = vmatprep.subr.bf16.mxu0 0
    %2731 = vmatpush1.bf16.msra.mxu0 %v2396
    %2732 = vmatprep.subr.bf16.mxu0 0
    %2733 = vmatpush1.bf16.msra.mxu0 %v2397
    %2734 = vmatprep.subr.bf16.mxu0 0
    %2735 = vmatpush1.bf16.msra.mxu0 %v2398
    %2736 = vmatprep.subr.bf16.mxu0 0
    %2737 = vmatpush1.bf16.msra.mxu0 %v2399
    %2738 = vmatprep.subr.bf16.mxu0 0
    %2739 = vmatpush1.bf16.msra.mxu0 %v2400
    %2740 = vmatprep.subr.bf16.mxu0 0
    %2741 = vmatpush1.bf16.msra.mxu0 %v2401
    %2742 = vmatprep.subr.bf16.mxu0 0
    %2743 = vmatpush1.bf16.msra.mxu0 %v2402
    %2744 = vmatprep.subr.bf16.mxu0 0
    %2745 = vmatpush1.bf16.msra.mxu0 %v2403
    %2746 = vmatprep.subr.bf16.mxu0 0
    %2747 = vmatpush1.bf16.msra.mxu0 %v2404
    %2748 = vmatprep.subr.bf16.mxu0 0
    %2749 = vmatpush1.bf16.msra.mxu0 %v2405
    %2750 = vmatprep.mubr.bf16.mxu0 %v1558
    %2751 = vmatmul.mubr.bf16.gmra.mrb[0].mxu0 %v1557
    %v2752 = vpop.f32.mrb[0].mxu0
    %v2753 = vadd.f32 %v2713, %v2752
    %v2754 = vpop.f32.mrb[0].mxu0
    %v2755 = vpop.f32.mrb[0].mxu0
    %v2756 = vpop.f32.mrb[0].mxu0
    %2757 = vdwg.mxu0
    %2758 = vmatprep.subr.bf16.mxu0 0
    %2759 = vmatpush1.bf16.msra.mxu0 %v2406
    %2760 = vmatprep.subr.bf16.mxu0 0
    %2761 = vmatpush1.bf16.msra.mxu0 %v2407
    %2762 = vmatprep.subr.bf16.mxu0 0
    %2763 = vmatpush1.bf16.msra.mxu0 %v2408
    %2764 = vmatprep.subr.bf16.mxu0 0
    %2765 = vmatpush1.bf16.msra.mxu0 %v2409
    %2766 = vmatprep.subr.bf16.mxu0 0
    %2767 = vmatpush1.bf16.msra.mxu0 %v2410
    %2768 = vmatprep.subr.bf16.mxu0 0
    %2769 = vmatpush1.bf16.msra.mxu0 %v2411
    %2770 = vmatprep.subr.bf16.mxu0 0
    %2771 = vmatpush1.bf16.msra.mxu0 %v2412
    %2772 = vmatprep.subr.bf16.mxu0 0
    %2773 = vmatpush1.bf16.msra.mxu0 %v2413
    %2774 = vmatprep.subr.bf16.mxu0 0
    %2775 = vmatpush1.bf16.msra.mxu0 %v2414
    %2776 = vmatprep.subr.bf16.mxu0 0
    %2777 = vmatpush1.bf16.msra.mxu0 %v2415
    %2778 = vmatprep.subr.bf16.mxu0 0
    %2779 = vmatpush1.bf16.msra.mxu0 %v2416
    %2780 = vmatprep.subr.bf16.mxu0 0
    %2781 = vmatpush1.bf16.msra.mxu0 %v2417
    %2782 = vmatprep.subr.bf16.mxu0 0
    %2783 = vmatpush1.bf16.msra.mxu0 %v2418
    %2784 = vmatprep.subr.bf16.mxu0 0
    %2785 = vmatpush1.bf16.msra.mxu0 %v2419
    %2786 = vmatprep.subr.bf16.mxu0 0
    %2787 = vmatpush1.bf16.msra.mxu0 %v2420
    %2788 = vmatprep.subr.bf16.mxu0 0
    %2789 = vmatpush1.bf16.msra.mxu0 %v2421
    %2790 = vmatprep.mubr.bf16.mxu0 %v1560
    %2791 = vmatmul.mubr.bf16.gmra.mrb[0].mxu0 %v1559
    %v2792 = vpop.f32.mrb[0].mxu0
    %v2793 = vadd.f32 %v2753, %v2792
    %v2794 = vpop.f32.mrb[0].mxu0
    %v2795 = vpop.f32.mrb[0].mxu0
    %v2796 = vpop.f32.mrb[0].mxu0
    %2797 = vdwg.mxu0
    %2798 = vmatprep.subr.bf16.mxu0 0
    %2799 = vmatpush1.bf16.msra.mxu0 %v2422
    %2800 = vmatprep.subr.bf16.mxu0 0
    %2801 = vmatpush1.bf16.msra.mxu0 %v2423
    %2802 = vmatprep.subr.bf16.mxu0 0
    %2803 = vmatpush1.bf16.msra.mxu0 %v2424
    %2804 = vmatprep.subr.bf16.mxu0 0
    %2805 = vmatpush1.bf16.msra.mxu0 %v2425
    %2806 = vmatprep.subr.bf16.mxu0 0
    %2807 = vmatpush1.bf16.msra.mxu0 %v2426
    %2808 = vmatprep.subr.bf16.mxu0 0
    %2809 = vmatpush1.bf16.msra.mxu0 %v2427
    %2810 = vmatprep.subr.bf16.mxu0 0
    %2811 = vmatpush1.bf16.msra.mxu0 %v2428
    %2812 = vmatprep.subr.bf16.mxu0 0
    %2813 = vmatpush1.bf16.msra.mxu0 %v2429
    %2814 = vmatprep.subr.bf16.mxu0 0
    %2815 = vmatpush1.bf16.msra.mxu0 %v2430
    %2816 = vmatprep.subr.bf16.mxu0 0
    %2817 = vmatpush1.bf16.msra.mxu0 %v2431
    %2818 = vmatprep.subr.bf16.mxu0 0
    %2819 = vmatpush1.bf16.msra.mxu0 %v2432
    %2820 = vmatprep.subr.bf16.mxu0 0
    %2821 = vmatpush1.bf16.msra.mxu0 %v2433
    %2822 = vmatprep.subr.bf16.mxu0 0
    %2823 = vmatpush1.bf16.msra.mxu0 %v2434
    %2824 = vmatprep.subr.bf16.mxu0 0
    %2825 = vmatpush1.bf16.msra.mxu0 %v2435
    %2826 = vmatprep.subr.bf16.mxu0 0
    %2827 = vmatpush1.bf16.msra.mxu0 %v2436
    %2828 = vmatprep.subr.bf16.mxu0 0
    %2829 = vmatpush1.bf16.msra.mxu0 %v2437
    %2830 = vmatprep.mubr.bf16.mxu0 %v1562
    %2831 = vmatmul.mubr.bf16.gmra.mrb[0].mxu0 %v1561
    %v2832 = vpop.f32.mrb[0].mxu0
    %v2833 = vadd.f32 %v2793, %v2832
    %v2834 = vpop.f32.mrb[0].mxu0
    %v2835 = vpop.f32.mrb[0].mxu0
    %v2836 = vpop.f32.mrb[0].mxu0
    %2837 = vdwg.mxu0
    %2838 = vmatprep.subr.bf16.mxu0 0
    %2839 = vmatpush1.bf16.msra.mxu0 %v2438
    %2840 = vmatprep.subr.bf16.mxu0 0
    %2841 = vmatpush1.bf16.msra.mxu0 %v2439
    %2842 = vmatprep.subr.bf16.mxu0 0
    %2843 = vmatpush1.bf16.msra.mxu0 %v2440
    %2844 = vmatprep.subr.bf16.mxu0 0
    %2845 = vmatpush1.bf16.msra.mxu0 %v2441
    %2846 = vmatprep.subr.bf16.mxu0 0
    %2847 = vmatpush1.bf16.msra.mxu0 %v2442
    %2848 = vmatprep.subr.bf16.mxu0 0
    %2849 = vmatpush1.bf16.msra.mxu0 %v2443
    %2850 = vmatprep.subr.bf16.mxu0 0
    %2851 = vmatpush1.bf16.msra.mxu0 %v2444
    %2852 = vmatprep.subr.bf16.mxu0 0
    %2853 = vmatpush1.bf16.msra.mxu0 %v2445
    %2854 = vmatprep.subr.bf16.mxu0 0
    %2855 = vmatpush1.bf16.msra.mxu0 %v2446
    %2856 = vmatprep.subr.bf16.mxu0 0
    %2857 = vmatpush1.bf16.msra.mxu0 %v2447
    %2858 = vmatprep.subr.bf16.mxu0 0
    %2859 = vmatpush1.bf16.msra.mxu0 %v2448
    %2860 = vmatprep.subr.bf16.mxu0 0
    %2861 = vmatpush1.bf16.msra.mxu0 %v2449
    %2862 = vmatprep.subr.bf16.mxu0 0
    %2863 = vmatpush1.bf16.msra.mxu0 %v2450
    %2864 = vmatprep.subr.bf16.mxu0 0
    %2865 = vmatpush1.bf16.msra.mxu0 %v2451
    %2866 = vmatprep.subr.bf16.mxu0 0
    %2867 = vmatpush1.bf16.msra.mxu0 %v2452
    %2868 = vmatprep.subr.bf16.mxu0 0
    %2869 = vmatpush1.bf16.msra.mxu0 %v2453
    %2870 = vmatprep.mubr.bf16.mxu0 %v1564
    %2871 = vmatmul.mubr.bf16.gmra.mrb[0].mxu0 %v1563
    %v2872 = vpop.f32.mrb[0].mxu0
    %v2873 = vadd.f32 %v2833, %v2872
    %v2874 = vpop.f32.mrb[0].mxu0
    %v2875 = vpop.f32.mrb[0].mxu0
    %v2876 = vpop.f32.mrb[0].mxu0
    %2877 = vdwg.mxu0
    %2878 = vmatprep.subr.bf16.mxu0 0
    %2879 = vmatpush1.bf16.msra.mxu0 %v2454
    %2880 = vmatprep.subr.bf16.mxu0 0
    %2881 = vmatpush1.bf16.msra.mxu0 %v2455
    %2882 = vmatprep.subr.bf16.mxu0 0
    %2883 = vmatpush1.bf16.msra.mxu0 %v2456
    %2884 = vmatprep.subr.bf16.mxu0 0
    %2885 = vmatpush1.bf16.msra.mxu0 %v2457
    %2886 = vmatprep.subr.bf16.mxu0 0
    %2887 = vmatpush1.bf16.msra.mxu0 %v2458
    %2888 = vmatprep.subr.bf16.mxu0 0
    %2889 = vmatpush1.bf16.msra.mxu0 %v2459
    %2890 = vmatprep.subr.bf16.mxu0 0
    %2891 = vmatpush1.bf16.msra.mxu0 %v2460
    %2892 = vmatprep.subr.bf16.mxu0 0
    %2893 = vmatpush1.bf16.msra.mxu0 %v2461
    %2894 = vmatprep.subr.bf16.mxu0 0
    %2895 = vmatpush1.bf16.msra.mxu0 %v2462
    %2896 = vmatprep.subr.bf16.mxu0 0
    %2897 = vmatpush1.bf16.msra.mxu0 %v2463
    %2898 = vmatprep.subr.bf16.mxu0 0
    %2899 = vmatpush1.bf16.msra.mxu0 %v2464
    %2900 = vmatprep.subr.bf16.mxu0 0
    %2901 = vmatpush1.bf16.msra.mxu0 %v2465
    %2902 = vmatprep.subr.bf16.mxu0 0
    %2903 = vmatpush1.bf16.msra.mxu0 %v2466
    %2904 = vmatprep.subr.bf16.mxu0 0
    %2905 = vmatpush1.bf16.msra.mxu0 %v2467
    %2906 = vmatprep.subr.bf16.mxu0 0
    %2907 = vmatpush1.bf16.msra.mxu0 %v2468
    %2908 = vmatprep.subr.bf16.mxu0 0
    %2909 = vmatpush1.bf16.msra.mxu0 %v2469
    %2910 = vmatprep.mubr.bf16.mxu0 %v1566
    %2911 = vmatmul.mubr.bf16.gmra.mrb[0].mxu0 %v1565
    %v2912 = vpop.f32.mrb[0].mxu0
    %v2913 = vadd.f32 %v2873, %v2912
    %v2914 = vpop.f32.mrb[0].mxu0
    %v2915 = vpop.f32.mrb[0].mxu0
    %v2916 = vpop.f32.mrb[0].mxu0
    %2917 = vdwg.mxu0
    %v2918 = vmax.f32 %v2913, 0.0
    %2919 = vst [vmem:[#allocation13] sm:$0xff] %v2918
    // Predicated region
    $region58: #{tpu_custom_call.1} parent=1 // pred_check
      _
    $region59: #{tpu_custom_call.1} parent=1 // pred_check_branch
      %2921 = sbr.rel (0) target = $region61
    $region60: #{tpu_custom_call.1} parent=1 // pred_region
      %s2923 = ssub.s32 128, 128
      %2924 = vsyncadd [#allocation4], %s2923
      %s2926 = sshll.u32 [#allocation13], 4
      %s2927 = int_to_ptr.vmem [resolvable:$true] %s2926
      %2929 = dma.vmem_to_hbm [thread:$0]  %s2927, 128, %s8, [#allocation4]
    $region61: #{tpu_custom_call.1} parent=1 // pred_fallthru
      _
    // Predicated region
    $region62: #{tpu_custom_call.1} parent=1 // pred_check
      _
    $region63: #{tpu_custom_call.1} parent=1 // pred_check_branch
      %2931 = sbr.rel (0) target = $region65
    $region64: #{tpu_custom_call.1} parent=1 // pred_region
      %2932 = dma.done [#allocation4], 128
    $region65: #{tpu_custom_call.1} parent=1 // pred_fallthru
      _
    %2933 = vsyncpa [#allocation3], 1
    %2934 = vsyncpa [#allocation6], 1
    %2935 = vsyncpa [#allocation9], 1
    %2936 = vsyncpa [#allocation12], 1
    %2937 = vsyncpa [#allocation4], 1

</llo_original>
